<compile_context>
chip_gen: v7x
topology: tpu7x:2x2x1
jax: 0.10.0
libtpu: 0.0.40
codegen_flags: <defaults>
</compile_context>

<pallas_src>
import jax
import jax.numpy as jnp
import numpy as np
from jax.experimental import pallas as pl
from jax.experimental.pallas import tpu as pltpu

MAX_K = 9            # all depthwise kernels are zero-padded to 9 taps (centered)
GROUPS = 4           # GroupNorm groups == number of channel groups
GN_EPS = 1e-5
KERNEL_SIZES = [3, 5, 7, 9]

# Packed parameter layout: one (C, PPACK) f32 array (single BlockSpec / DMA).
PPACK = 16
COL_BIAS = 9         # conv bias
COL_GNH_W = 10       # GroupNorm (H path) weight
COL_GNH_B = 11       # GroupNorm (H path) bias
COL_GNW_W = 12       # GroupNorm (W path) weight
COL_GNW_B = 13       # GroupNorm (W path) bias


# ---------------------------------------------------------------------------
# Pass 1: gates kernel (conv + GroupNorm + sigmoid on pooled features)
# ---------------------------------------------------------------------------
def _gated_path(v, conv_w, conv_b, gn_w, gn_b):
    """v: (C, L) f32.  Depthwise 9-tap conv ('same' zero pad) + GroupNorm(4) + sigmoid."""
    C, L = v.shape
    gc = C // GROUPS
    pad = MAX_K // 2

    # Depthwise conv: 9 static taps; tap weights pre-broadcast (hoisted out of loop).
    vp = jnp.pad(v, ((0, 0), (pad, pad)))                     # (C, L + 8)
    taps = [jnp.broadcast_to(conv_w[:, k:k + 1], (C, L)) for k in range(MAX_K)]
    acc = jnp.broadcast_to(conv_b, (C, L))                    # start from bias
    for k in range(MAX_K):
        acc = acc + vp[:, k:k + L] * taps[k]

    # Vectorized GroupNorm(4): one pass (sum, sum-of-squares) per group,
    # stats broadcast back to per-channel (C, 1) vectors (no concat).
    inv_cnt = 1.0 / float(gc * L)
    ch = jax.lax.broadcasted_iota(jnp.int32, (C, 1), 0)       # channel index
    mean_c = jnp.zeros((C, 1), jnp.float32)
    rstd_c = jnp.zeros((C, 1), jnp.float32)
    for g in range(GROUPS):                                   # static, GROUPS == 4
        seg = acc[g * gc:(g + 1) * gc, :]
        m = jnp.sum(seg) * inv_cnt
        ex2 = jnp.sum(seg * seg) * inv_cnt
        var = ex2 - m * m                                     # biased variance (PyTorch)
        rs = jax.lax.rsqrt(var + GN_EPS)                      # EUP slot
        in_g = jnp.logical_and(ch >= g * gc, ch < (g + 1) * gc)
        mean_c = jnp.where(in_g, m, mean_c)
        rstd_c = jnp.where(in_g, rs, rstd_c)

    y = (acc - mean_c) * rstd_c * gn_w + gn_b                 # per-channel affine
    return jax.nn.sigmoid(y)


def gates_kernel(x_ref, p_ref, h_ref, w_ref):
    x = x_ref[0].astype(jnp.float32)                          # (C, H, W), f32 stats
    p = p_ref[...].astype(jnp.float32)                        # (C, PPACK)
    conv_w = p[:, :MAX_K]                                     # (C, 9)
    conv_b = p[:, COL_BIAS:COL_BIAS + 1]                      # (C, 1)

    x_h = jnp.mean(x, axis=2)                                 # (C, H)  mean over W
    x_w = jnp.mean(x, axis=1)                                 # (C, W)  mean over H

    h_ref[0] = _gated_path(x_h, conv_w, conv_b,
                           p[:, COL_GNH_W:COL_GNH_W + 1],
                           p[:, COL_GNH_B:COL_GNH_B + 1]).astype(h_ref.dtype)
    w_ref[0] = _gated_path(x_w, conv_w, conv_b,
                           p[:, COL_GNW_W:COL_GNW_W + 1],
                           p[:, COL_GNW_B:COL_GNW_B + 1]).astype(w_ref.dtype)


# ---------------------------------------------------------------------------
# Pass 2: lane-dense streaming apply kernel
# ---------------------------------------------------------------------------
def apply_kernel(x_ref, h_ref, w_ref, eh_ref, ew_ref, o_ref):
    # Replicate gates onto the flattened tile with tiny MXU matmuls against
    # 0/1 selection matrices (exact: one nonzero term per column).
    h_rep = jnp.dot(h_ref[0], eh_ref[...], preferred_element_type=jnp.float32)  # (C, TILE)
    w_rep = jnp.dot(w_ref[0], ew_ref[...], preferred_element_type=jnp.float32)  # (C, TILE)
    o_ref[0] = (x_ref[0].astype(jnp.float32) * h_rep * w_rep).astype(o_ref.dtype)


# ---------------------------------------------------------------------------
# Wrapper
# ---------------------------------------------------------------------------
def _choose_tile(hw, target=2048):
    """Largest multiple of 128 that divides hw and is <= target; else full hw."""
    if hw % 128 != 0:
        return hw
    best = None
    t = 128
    while t <= min(hw, target):
        if hw % t == 0:
            best = t
        t += 128
    return best if best is not None else hw


def attention_s(x, params):
    B, C, H, W = x.shape
    HW = H * W

    # ---- Pass 1: gates (per batch) ----------------------------------------
    h_attn, w_attn = pl.pallas_call(
        gates_kernel,
        out_shape=(jax.ShapeDtypeStruct((B, C, H), jnp.float32),
                   jax.ShapeDtypeStruct((B, C, W), jnp.float32)),
        grid=(B,),
        in_specs=[pl.BlockSpec((1, C, H, W), lambda b: (b, 0, 0, 0)),
                  pl.BlockSpec((C, PPACK), lambda b: (0, 0))],
        out_specs=(pl.BlockSpec((1, C, H), lambda b: (b, 0, 0)),
                   pl.BlockSpec((1, C, W), lambda b: (b, 0, 0))),
        compiler_params=pltpu.CompilerParams(dimension_semantics=("parallel",)),
    )(x, params)

    # ---- Pass 2: streaming apply over flattened, lane-dense slabs ----------
    x_flat = x.reshape(B, C, HW)
    TILE = _choose_tile(HW)
    T = HW // TILE

    # 0/1 replication matrices: eh[h, j] = (j // W == h), ew[w, j] = (j % W == w)
    j = jnp.arange(HW)
    eh = (j[None, :] // W == jnp.arange(H)[:, None]).astype(jnp.float32)   # (H, HW)
    ew = (j[None, :] % W == jnp.arange(W)[:, None]).astype(jnp.float32)    # (W, HW)

    out_flat = pl.pallas_call(
        apply_kernel,
        out_shape=jax.ShapeDtypeStruct((B, C, HW), x.dtype),
        grid=(B, T),
        in_specs=[pl.BlockSpec((1, C, TILE), lambda b, t: (b, 0, t)),
                  pl.BlockSpec((1, C, H), lambda b, t: (b, 0, 0)),
                  pl.BlockSpec((1, C, W), lambda b, t: (b, 0, 0)),
                  pl.BlockSpec((H, TILE), lambda b, t: (0, t)),
                  pl.BlockSpec((W, TILE), lambda b, t: (0, t))],
        out_specs=pl.BlockSpec((1, C, TILE), lambda b, t: (b, 0, t)),
        compiler_params=pltpu.CompilerParams(
            dimension_semantics=("parallel", "parallel")),
    )(x_flat, h_attn, w_attn, eh, ew)

    return out_flat.reshape(B, C, H, W)


# ---------------------------------------------------------------------------
# Deterministic parameter construction (synthetic; mimics module __init__ shapes)
# ---------------------------------------------------------------------------
def build_params(key, C):
    gc = C // GROUPS
    keys = jax.random.split(key, 12)
    p = jnp.zeros((C, PPACK), jnp.float32)
    for i, k in enumerate(KERNEL_SIZES):
        w = jax.random.normal(keys[i], (gc, k), jnp.float32) * (1.0 / k) ** 0.5
        start = (MAX_K - k) // 2                          # center k taps inside 9
        p = p.at[i * gc:(i + 1) * gc, start:start + k].set(w)
        b = jax.random.normal(keys[4 + i], (gc,), jnp.float32) * 0.1
        p = p.at[i * gc:(i + 1) * gc, COL_BIAS].set(b)
    p = p.at[:, COL_GNH_W].set(1.0 + 0.05 * jax.random.normal(keys[8], (C,), jnp.float32))
    p = p.at[:, COL_GNH_B].set(0.05 * jax.random.normal(keys[9], (C,), jnp.float32))
    p = p.at[:, COL_GNW_W].set(1.0 + 0.05 * jax.random.normal(keys[10], (C,), jnp.float32))
    p = p.at[:, COL_GNW_B].set(0.05 * jax.random.normal(keys[11], (C,), jnp.float32))
    return p


# ---------------------------------------------------------------------------
# Pure-JAX reference (mirrors PyTorch semantics) for validation
# ---------------------------------------------------------------------------
def reference(x, params):
    B, C, H, W = x.shape
    conv_w = params[:, :MAX_K]
    conv_b = params[:, COL_BIAS][:, None]
    gnh_w = params[:, COL_GNH_W][:, None]
    gnh_b = params[:, COL_GNH_B][:, None]
    gnw_w = params[:, COL_GNW_W][:, None]
    gnw_b = params[:, COL_GNW_B][:, None]

    def path(v, gw, gb):                      # v: (B, C, L)
        L = v.shape[2]
        pad = MAX_K // 2
        vp = jnp.pad(v, ((0, 0), (0, 0), (pad, pad)))
        acc = jnp.zeros_like(v)
        for k in range(MAX_K):
            acc = acc + vp[:, :, k:k + L] * conv_w[None, :, k:k + 1]
        acc = acc + conv_b[None, :, :]
        y = acc.reshape(B, GROUPS, (C // GROUPS) * L)
        m = y.mean(axis=2, keepdims=True)
        var = y.var(axis=2, keepdims=True)
        y = (y - m) / jnp.sqrt(var + GN_EPS)
        y = y.reshape(B, C, L)
        y = y * gw[None, :, :] + gb[None, :, :]
        return jax.nn.sigmoid(y)

    x_h = x.mean(axis=3)                      # (B, C, H)
    x_w = x.mean(axis=2)                      # (B, C, W)
    h_attn = path(x_h, gnh_w, gnh_b)          # (B, C, H)
    w_attn = path(x_w, gnw_w, gnw_b)          # (B, C, W)
    return x * h_attn[:, :, :, None] * w_attn[:, :, None, :]


if __name__ == "__main__":
    B, C, H, W = 2, 8, 16, 16                 # dim=8 (divisible by 4); head_num unused in forward
    key = jax.random.PRNGKey(0)
    kx, kp = jax.random.split(key)
    x = jax.random.normal(kx, (B, C, H, W), jnp.float32)
    params = build_params(kp, C)

    out = attention_s(x, params)
    out = jax.block_until_ready(out)

    ref = reference(x, params)
    np.testing.assert_allclose(np.asarray(out), np.asarray(ref),
                               rtol=1e-4, atol=1e-4)
    print("KERNEL_OK")
</pallas_src>

<mosaic_0001>
module attributes {stable_mosaic.version = 11 : i64} {
  func.func @gates_kernel(%arg0: i32, %arg1: memref<1x8x16x16xf32, #tpu.memory_space<vmem>>, %arg2: memref<8x16xf32, #tpu.memory_space<vmem>>, %arg3: memref<1x8x16xf32, #tpu.memory_space<vmem>>, %arg4: memref<1x8x16xf32, #tpu.memory_space<vmem>>) attributes {dimension_semantics = [#tpu.dimension_semantics<parallel>], iteration_bounds = array<i64: 2>, scalar_prefetch = 0 : i64, scratch_operands = 0 : i64, tpu.core_type = #tpu.core_type<tc>, window_params = [{transform_indices = @transform_0, window_bounds = array<i64: 1, 8, 16, 16>}, {pipeline_mode = #tpu.pipeline_mode<synchronous>, transform_indices = @transform_1, window_bounds = array<i64: 8, 16>}, {transform_indices = @transform_2, window_bounds = array<i64: 1, 8, 16>}, {transform_indices = @transform_3, window_bounds = array<i64: 1, 8, 16>}]} {
    %c0 = arith.constant 0 : index
    %c0_0 = arith.constant 0 : index
    %c0_1 = arith.constant 0 : index
    %c0_2 = arith.constant 0 : index
    %0 = vector.load %arg1[%c0, %c0_0, %c0_1, %c0_2] : memref<1x8x16x16xf32, #tpu.memory_space<vmem>>, vector<1x8x16x16xf32>
    %1 = vector.shape_cast %0 : vector<1x8x16x16xf32> to vector<8x16x16xf32>
    %c0_3 = arith.constant 0 : index
    %c0_4 = arith.constant 0 : index
    %2 = vector.load %arg2[%c0_3, %c0_4] : memref<8x16xf32, #tpu.memory_space<vmem>>, vector<8x16xf32>
    %3 = vector.extract_strided_slice %2 {offsets = [0, 0], sizes = [8, 9], strides = [1, 1]} : vector<8x16xf32> to vector<8x9xf32>
    %4 = vector.extract_strided_slice %2 {offsets = [0, 9], sizes = [8, 1], strides = [1, 1]} : vector<8x16xf32> to vector<8x1xf32>
    %cst = arith.constant dense<0.000000e+00> : vector<8x16xf32>
    %5 = vector.multi_reduction <add>, %1, %cst [2] : vector<8x16x16xf32> to vector<8x16xf32>
    %cst_5 = arith.constant 1.600000e+01 : f32
    %6 = vector.broadcast %cst_5 : f32 to vector<8x16xf32>
    %7 = arith.divf %5, %6 : vector<8x16xf32>
    %cst_6 = arith.constant dense<0.000000e+00> : vector<8x16xf32>
    %8 = vector.multi_reduction <add>, %1, %cst_6 [1] : vector<8x16x16xf32> to vector<8x16xf32>
    %cst_7 = arith.constant 1.600000e+01 : f32
    %9 = vector.broadcast %cst_7 : f32 to vector<8x16xf32>
    %10 = arith.divf %8, %9 : vector<8x16xf32>
    %11 = vector.extract_strided_slice %2 {offsets = [0, 10], sizes = [8, 1], strides = [1, 1]} : vector<8x16xf32> to vector<8x1xf32>
    %12 = vector.extract_strided_slice %2 {offsets = [0, 11], sizes = [8, 1], strides = [1, 1]} : vector<8x16xf32> to vector<8x1xf32>
    %c0_i32 = arith.constant 0 : i32
    %13 = arith.sitofp %c0_i32 : i32 to f32
    %14 = vector.broadcast %13 : f32 to vector<8x4xf32>
    %15 = tpu.concatenate %14, %7 in 1 : vector<8x4xf32>, vector<8x16xf32> -> vector<8x20xf32>
    %16 = vector.broadcast %13 : f32 to vector<8x4xf32>
    %17 = tpu.concatenate %15, %16 in 1 : vector<8x20xf32>, vector<8x4xf32> -> vector<8x24xf32>
    %18 = vector.extract_strided_slice %3 {offsets = [0, 0], sizes = [8, 1], strides = [1, 1]} : vector<8x9xf32> to vector<8x1xf32>
    %19 = vector.shape_cast %18 : vector<8x1xf32> to vector<8x1xf32>
    %20 = vector.broadcast %19 : vector<8x1xf32> to vector<8x16xf32>
    %21 = vector.extract_strided_slice %3 {offsets = [0, 1], sizes = [8, 1], strides = [1, 1]} : vector<8x9xf32> to vector<8x1xf32>
    %22 = vector.shape_cast %21 : vector<8x1xf32> to vector<8x1xf32>
    %23 = vector.broadcast %22 : vector<8x1xf32> to vector<8x16xf32>
    %24 = vector.extract_strided_slice %3 {offsets = [0, 2], sizes = [8, 1], strides = [1, 1]} : vector<8x9xf32> to vector<8x1xf32>
    %25 = vector.shape_cast %24 : vector<8x1xf32> to vector<8x1xf32>
    %26 = vector.broadcast %25 : vector<8x1xf32> to vector<8x16xf32>
    %27 = vector.extract_strided_slice %3 {offsets = [0, 3], sizes = [8, 1], strides = [1, 1]} : vector<8x9xf32> to vector<8x1xf32>
    %28 = vector.shape_cast %27 : vector<8x1xf32> to vector<8x1xf32>
    %29 = vector.broadcast %28 : vector<8x1xf32> to vector<8x16xf32>
    %30 = vector.extract_strided_slice %3 {offsets = [0, 4], sizes = [8, 1], strides = [1, 1]} : vector<8x9xf32> to vector<8x1xf32>
    %31 = vector.shape_cast %30 : vector<8x1xf32> to vector<8x1xf32>
    %32 = vector.broadcast %31 : vector<8x1xf32> to vector<8x16xf32>
    %33 = vector.extract_strided_slice %3 {offsets = [0, 5], sizes = [8, 1], strides = [1, 1]} : vector<8x9xf32> to vector<8x1xf32>
    %34 = vector.shape_cast %33 : vector<8x1xf32> to vector<8x1xf32>
    %35 = vector.broadcast %34 : vector<8x1xf32> to vector<8x16xf32>
    %36 = vector.extract_strided_slice %3 {offsets = [0, 6], sizes = [8, 1], strides = [1, 1]} : vector<8x9xf32> to vector<8x1xf32>
    %37 = vector.shape_cast %36 : vector<8x1xf32> to vector<8x1xf32>
    %38 = vector.broadcast %37 : vector<8x1xf32> to vector<8x16xf32>
    %39 = vector.extract_strided_slice %3 {offsets = [0, 7], sizes = [8, 1], strides = [1, 1]} : vector<8x9xf32> to vector<8x1xf32>
    %40 = vector.shape_cast %39 : vector<8x1xf32> to vector<8x1xf32>
    %41 = vector.broadcast %40 : vector<8x1xf32> to vector<8x16xf32>
    %42 = vector.extract_strided_slice %3 {offsets = [0, 8], sizes = [8, 1], strides = [1, 1]} : vector<8x9xf32> to vector<8x1xf32>
    %43 = vector.shape_cast %42 : vector<8x1xf32> to vector<8x1xf32>
    %44 = vector.broadcast %43 : vector<8x1xf32> to vector<8x16xf32>
    %45 = vector.shape_cast %4 : vector<8x1xf32> to vector<8x1xf32>
    %46 = vector.broadcast %45 : vector<8x1xf32> to vector<8x16xf32>
    %47 = vector.extract_strided_slice %17 {offsets = [0, 0], sizes = [8, 16], strides = [1, 1]} : vector<8x24xf32> to vector<8x16xf32>
    %48 = arith.mulf %47, %20 : vector<8x16xf32>
    %49 = arith.addf %46, %48 : vector<8x16xf32>
    %50 = vector.extract_strided_slice %17 {offsets = [0, 1], sizes = [8, 16], strides = [1, 1]} : vector<8x24xf32> to vector<8x16xf32>
    %51 = arith.mulf %50, %23 : vector<8x16xf32>
    %52 = arith.addf %49, %51 : vector<8x16xf32>
    %53 = vector.extract_strided_slice %17 {offsets = [0, 2], sizes = [8, 16], strides = [1, 1]} : vector<8x24xf32> to vector<8x16xf32>
    %54 = arith.mulf %53, %26 : vector<8x16xf32>
    %55 = arith.addf %52, %54 : vector<8x16xf32>
    %56 = vector.extract_strided_slice %17 {offsets = [0, 3], sizes = [8, 16], strides = [1, 1]} : vector<8x24xf32> to vector<8x16xf32>
    %57 = arith.mulf %56, %29 : vector<8x16xf32>
    %58 = arith.addf %55, %57 : vector<8x16xf32>
    %59 = vector.extract_strided_slice %17 {offsets = [0, 4], sizes = [8, 16], strides = [1, 1]} : vector<8x24xf32> to vector<8x16xf32>
    %60 = arith.mulf %59, %32 : vector<8x16xf32>
    %61 = arith.addf %58, %60 : vector<8x16xf32>
    %62 = vector.extract_strided_slice %17 {offsets = [0, 5], sizes = [8, 16], strides = [1, 1]} : vector<8x24xf32> to vector<8x16xf32>
    %63 = arith.mulf %62, %35 : vector<8x16xf32>
    %64 = arith.addf %61, %63 : vector<8x16xf32>
    %65 = vector.extract_strided_slice %17 {offsets = [0, 6], sizes = [8, 16], strides = [1, 1]} : vector<8x24xf32> to vector<8x16xf32>
    %66 = arith.mulf %65, %38 : vector<8x16xf32>
    %67 = arith.addf %64, %66 : vector<8x16xf32>
    %68 = vector.extract_strided_slice %17 {offsets = [0, 7], sizes = [8, 16], strides = [1, 1]} : vector<8x24xf32> to vector<8x16xf32>
    %69 = arith.mulf %68, %41 : vector<8x16xf32>
    %70 = arith.addf %67, %69 : vector<8x16xf32>
    %71 = vector.extract_strided_slice %17 {offsets = [0, 8], sizes = [8, 16], strides = [1, 1]} : vector<8x24xf32> to vector<8x16xf32>
    %72 = arith.mulf %71, %44 : vector<8x16xf32>
    %73 = arith.addf %70, %72 : vector<8x16xf32>
    %74 = tpu.iota {dimensions = array<i32: 0>} : vector<8x1xi32>
    %cst_8 = arith.constant 0.000000e+00 : f32
    %75 = vector.broadcast %cst_8 : f32 to vector<8x1xf32>
    %cst_9 = arith.constant 0.000000e+00 : f32
    %76 = vector.broadcast %cst_9 : f32 to vector<8x1xf32>
    %77 = vector.extract_strided_slice %73 {offsets = [0, 0], sizes = [2, 16], strides = [1, 1]} : vector<8x16xf32> to vector<2x16xf32>
    %78 = vector.shape_cast %77 : vector<2x16xf32> to vector<1x2x16xf32>
    %cst_10 = arith.constant dense<0.000000e+00> : vector<1xf32>
    %79 = vector.multi_reduction <add>, %78, %cst_10 [1, 2] : vector<1x2x16xf32> to vector<1xf32>
    %80 = vector.shape_cast %79 : vector<1xf32> to vector<1x1x1xf32>
    %81 = vector.extract %80[0, 0, 0] : f32 from vector<1x1x1xf32>
    %cst_11 = arith.constant 3.125000e-02 : f32
    %82 = arith.mulf %81, %cst_11 : f32
    %83 = arith.mulf %77, %77 : vector<2x16xf32>
    %84 = vector.shape_cast %83 : vector<2x16xf32> to vector<1x2x16xf32>
    %cst_12 = arith.constant dense<0.000000e+00> : vector<1xf32>
    %85 = vector.multi_reduction <add>, %84, %cst_12 [1, 2] : vector<1x2x16xf32> to vector<1xf32>
    %86 = vector.shape_cast %85 : vector<1xf32> to vector<1x1x1xf32>
    %87 = vector.extract %86[0, 0, 0] : f32 from vector<1x1x1xf32>
    %cst_13 = arith.constant 3.125000e-02 : f32
    %88 = arith.mulf %87, %cst_13 : f32
    %89 = arith.mulf %82, %82 : f32
    %90 = arith.subf %88, %89 : f32
    %cst_14 = arith.constant 9.99999974E-6 : f32
    %91 = arith.addf %90, %cst_14 : f32
    %92 = math.rsqrt %91 : f32
    %c0_i32_15 = arith.constant 0 : i32
    %93 = vector.broadcast %c0_i32_15 : i32 to vector<8x1xi32>
    %94 = arith.cmpi sge, %74, %93 : vector<8x1xi32>
    %c2_i32 = arith.constant 2 : i32
    %95 = vector.broadcast %c2_i32 : i32 to vector<8x1xi32>
    %96 = arith.cmpi slt, %74, %95 : vector<8x1xi32>
    %97 = arith.andi %94, %96 : vector<8x1xi1>
    %98 = vector.broadcast %82 : f32 to vector<8x1xf32>
    %99 = arith.select %97, %98, %75 : vector<8x1xi1>, vector<8x1xf32>
    %100 = vector.broadcast %92 : f32 to vector<8x1xf32>
    %101 = arith.select %97, %100, %76 : vector<8x1xi1>, vector<8x1xf32>
    %102 = vector.extract_strided_slice %73 {offsets = [2, 0], sizes = [2, 16], strides = [1, 1]} : vector<8x16xf32> to vector<2x16xf32>
    %103 = vector.shape_cast %102 : vector<2x16xf32> to vector<1x2x16xf32>
    %cst_16 = arith.constant dense<0.000000e+00> : vector<1xf32>
    %104 = vector.multi_reduction <add>, %103, %cst_16 [1, 2] : vector<1x2x16xf32> to vector<1xf32>
    %105 = vector.shape_cast %104 : vector<1xf32> to vector<1x1x1xf32>
    %106 = vector.extract %105[0, 0, 0] : f32 from vector<1x1x1xf32>
    %cst_17 = arith.constant 3.125000e-02 : f32
    %107 = arith.mulf %106, %cst_17 : f32
    %108 = arith.mulf %102, %102 : vector<2x16xf32>
    %109 = vector.shape_cast %108 : vector<2x16xf32> to vector<1x2x16xf32>
    %cst_18 = arith.constant dense<0.000000e+00> : vector<1xf32>
    %110 = vector.multi_reduction <add>, %109, %cst_18 [1, 2] : vector<1x2x16xf32> to vector<1xf32>
    %111 = vector.shape_cast %110 : vector<1xf32> to vector<1x1x1xf32>
    %112 = vector.extract %111[0, 0, 0] : f32 from vector<1x1x1xf32>
    %cst_19 = arith.constant 3.125000e-02 : f32
    %113 = arith.mulf %112, %cst_19 : f32
    %114 = arith.mulf %107, %107 : f32
    %115 = arith.subf %113, %114 : f32
    %cst_20 = arith.constant 9.99999974E-6 : f32
    %116 = arith.addf %115, %cst_20 : f32
    %117 = math.rsqrt %116 : f32
    %c2_i32_21 = arith.constant 2 : i32
    %118 = vector.broadcast %c2_i32_21 : i32 to vector<8x1xi32>
    %119 = arith.cmpi sge, %74, %118 : vector<8x1xi32>
    %c4_i32 = arith.constant 4 : i32
    %120 = vector.broadcast %c4_i32 : i32 to vector<8x1xi32>
    %121 = arith.cmpi slt, %74, %120 : vector<8x1xi32>
    %122 = arith.andi %119, %121 : vector<8x1xi1>
    %123 = vector.broadcast %107 : f32 to vector<8x1xf32>
    %124 = arith.select %122, %123, %99 : vector<8x1xi1>, vector<8x1xf32>
    %125 = vector.broadcast %117 : f32 to vector<8x1xf32>
    %126 = arith.select %122, %125, %101 : vector<8x1xi1>, vector<8x1xf32>
    %127 = vector.extract_strided_slice %73 {offsets = [4, 0], sizes = [2, 16], strides = [1, 1]} : vector<8x16xf32> to vector<2x16xf32>
    %128 = vector.shape_cast %127 : vector<2x16xf32> to vector<1x2x16xf32>
    %cst_22 = arith.constant dense<0.000000e+00> : vector<1xf32>
    %129 = vector.multi_reduction <add>, %128, %cst_22 [1, 2] : vector<1x2x16xf32> to vector<1xf32>
    %130 = vector.shape_cast %129 : vector<1xf32> to vector<1x1x1xf32>
    %131 = vector.extract %130[0, 0, 0] : f32 from vector<1x1x1xf32>
    %cst_23 = arith.constant 3.125000e-02 : f32
    %132 = arith.mulf %131, %cst_23 : f32
    %133 = arith.mulf %127, %127 : vector<2x16xf32>
    %134 = vector.shape_cast %133 : vector<2x16xf32> to vector<1x2x16xf32>
    %cst_24 = arith.constant dense<0.000000e+00> : vector<1xf32>
    %135 = vector.multi_reduction <add>, %134, %cst_24 [1, 2] : vector<1x2x16xf32> to vector<1xf32>
    %136 = vector.shape_cast %135 : vector<1xf32> to vector<1x1x1xf32>
    %137 = vector.extract %136[0, 0, 0] : f32 from vector<1x1x1xf32>
    %cst_25 = arith.constant 3.125000e-02 : f32
    %138 = arith.mulf %137, %cst_25 : f32
    %139 = arith.mulf %132, %132 : f32
    %140 = arith.subf %138, %139 : f32
    %cst_26 = arith.constant 9.99999974E-6 : f32
    %141 = arith.addf %140, %cst_26 : f32
    %142 = math.rsqrt %141 : f32
    %c4_i32_27 = arith.constant 4 : i32
    %143 = vector.broadcast %c4_i32_27 : i32 to vector<8x1xi32>
    %144 = arith.cmpi sge, %74, %143 : vector<8x1xi32>
    %c6_i32 = arith.constant 6 : i32
    %145 = vector.broadcast %c6_i32 : i32 to vector<8x1xi32>
    %146 = arith.cmpi slt, %74, %145 : vector<8x1xi32>
    %147 = arith.andi %144, %146 : vector<8x1xi1>
    %148 = vector.broadcast %132 : f32 to vector<8x1xf32>
    %149 = arith.select %147, %148, %124 : vector<8x1xi1>, vector<8x1xf32>
    %150 = vector.broadcast %142 : f32 to vector<8x1xf32>
    %151 = arith.select %147, %150, %126 : vector<8x1xi1>, vector<8x1xf32>
    %152 = vector.extract_strided_slice %73 {offsets = [6, 0], sizes = [2, 16], strides = [1, 1]} : vector<8x16xf32> to vector<2x16xf32>
    %153 = vector.shape_cast %152 : vector<2x16xf32> to vector<1x2x16xf32>
    %cst_28 = arith.constant dense<0.000000e+00> : vector<1xf32>
    %154 = vector.multi_reduction <add>, %153, %cst_28 [1, 2] : vector<1x2x16xf32> to vector<1xf32>
    %155 = vector.shape_cast %154 : vector<1xf32> to vector<1x1x1xf32>
    %156 = vector.extract %155[0, 0, 0] : f32 from vector<1x1x1xf32>
    %cst_29 = arith.constant 3.125000e-02 : f32
    %157 = arith.mulf %156, %cst_29 : f32
    %158 = arith.mulf %152, %152 : vector<2x16xf32>
    %159 = vector.shape_cast %158 : vector<2x16xf32> to vector<1x2x16xf32>
    %cst_30 = arith.constant dense<0.000000e+00> : vector<1xf32>
    %160 = vector.multi_reduction <add>, %159, %cst_30 [1, 2] : vector<1x2x16xf32> to vector<1xf32>
    %161 = vector.shape_cast %160 : vector<1xf32> to vector<1x1x1xf32>
    %162 = vector.extract %161[0, 0, 0] : f32 from vector<1x1x1xf32>
    %cst_31 = arith.constant 3.125000e-02 : f32
    %163 = arith.mulf %162, %cst_31 : f32
    %164 = arith.mulf %157, %157 : f32
    %165 = arith.subf %163, %164 : f32
    %cst_32 = arith.constant 9.99999974E-6 : f32
    %166 = arith.addf %165, %cst_32 : f32
    %167 = math.rsqrt %166 : f32
    %c6_i32_33 = arith.constant 6 : i32
    %168 = vector.broadcast %c6_i32_33 : i32 to vector<8x1xi32>
    %169 = arith.cmpi sge, %74, %168 : vector<8x1xi32>
    %c8_i32 = arith.constant 8 : i32
    %170 = vector.broadcast %c8_i32 : i32 to vector<8x1xi32>
    %171 = arith.cmpi slt, %74, %170 : vector<8x1xi32>
    %172 = arith.andi %169, %171 : vector<8x1xi1>
    %173 = vector.broadcast %157 : f32 to vector<8x1xf32>
    %174 = arith.select %172, %173, %149 : vector<8x1xi1>, vector<8x1xf32>
    %175 = vector.broadcast %167 : f32 to vector<8x1xf32>
    %176 = arith.select %172, %175, %151 : vector<8x1xi1>, vector<8x1xf32>
    %177 = vector.broadcast %174 : vector<8x1xf32> to vector<8x16xf32>
    %178 = arith.subf %73, %177 : vector<8x16xf32>
    %179 = vector.broadcast %176 : vector<8x1xf32> to vector<8x16xf32>
    %180 = arith.mulf %178, %179 : vector<8x16xf32>
    %181 = vector.broadcast %11 : vector<8x1xf32> to vector<8x16xf32>
    %182 = arith.mulf %180, %181 : vector<8x16xf32>
    %183 = vector.broadcast %12 : vector<8x1xf32> to vector<8x16xf32>
    %184 = arith.addf %182, %183 : vector<8x16xf32>
    %185 = arith.negf %184 : vector<8x16xf32>
    %186 = math.exp %185 : vector<8x16xf32>
    %cst_34 = arith.constant 1.000000e+00 : f32
    %187 = vector.broadcast %cst_34 : f32 to vector<8x16xf32>
    %188 = arith.addf %187, %186 : vector<8x16xf32>
    %189 = arith.divf %187, %188 : vector<8x16xf32>
    %c0_35 = arith.constant 0 : index
    %c0_36 = arith.constant 0 : index
    %c0_37 = arith.constant 0 : index
    %190 = vector.load %arg3[%c0_35, %c0_36, %c0_37] : memref<1x8x16xf32, #tpu.memory_space<vmem>>, vector<1x8x16xf32>
    %191 = vector.shape_cast %190 : vector<1x8x16xf32> to vector<8x16xf32>
    %192 = vector.shape_cast %189 : vector<8x16xf32> to vector<1x8x16xf32>
    tpu.vector_store %arg3[%c0_35, %c0_36, %c0_37], %192 {strides = array<i32>} : memref<1x8x16xf32, #tpu.memory_space<vmem>>, vector<1x8x16xf32>,
    %193 = vector.extract_strided_slice %2 {offsets = [0, 12], sizes = [8, 1], strides = [1, 1]} : vector<8x16xf32> to vector<8x1xf32>
    %194 = vector.extract_strided_slice %2 {offsets = [0, 13], sizes = [8, 1], strides = [1, 1]} : vector<8x16xf32> to vector<8x1xf32>
    %c0_i32_38 = arith.constant 0 : i32
    %195 = arith.sitofp %c0_i32_38 : i32 to f32
    %196 = vector.broadcast %195 : f32 to vector<8x4xf32>
    %197 = tpu.concatenate %196, %10 in 1 : vector<8x4xf32>, vector<8x16xf32> -> vector<8x20xf32>
    %198 = vector.broadcast %195 : f32 to vector<8x4xf32>
    %199 = tpu.concatenate %197, %198 in 1 : vector<8x20xf32>, vector<8x4xf32> -> vector<8x24xf32>
    %200 = vector.extract_strided_slice %3 {offsets = [0, 0], sizes = [8, 1], strides = [1, 1]} : vector<8x9xf32> to vector<8x1xf32>
    %201 = vector.shape_cast %200 : vector<8x1xf32> to vector<8x1xf32>
    %202 = vector.broadcast %201 : vector<8x1xf32> to vector<8x16xf32>
    %203 = vector.extract_strided_slice %3 {offsets = [0, 1], sizes = [8, 1], strides = [1, 1]} : vector<8x9xf32> to vector<8x1xf32>
    %204 = vector.shape_cast %203 : vector<8x1xf32> to vector<8x1xf32>
    %205 = vector.broadcast %204 : vector<8x1xf32> to vector<8x16xf32>
    %206 = vector.extract_strided_slice %3 {offsets = [0, 2], sizes = [8, 1], strides = [1, 1]} : vector<8x9xf32> to vector<8x1xf32>
    %207 = vector.shape_cast %206 : vector<8x1xf32> to vector<8x1xf32>
    %208 = vector.broadcast %207 : vector<8x1xf32> to vector<8x16xf32>
    %209 = vector.extract_strided_slice %3 {offsets = [0, 3], sizes = [8, 1], strides = [1, 1]} : vector<8x9xf32> to vector<8x1xf32>
    %210 = vector.shape_cast %209 : vector<8x1xf32> to vector<8x1xf32>
    %211 = vector.broadcast %210 : vector<8x1xf32> to vector<8x16xf32>
    %212 = vector.extract_strided_slice %3 {offsets = [0, 4], sizes = [8, 1], strides = [1, 1]} : vector<8x9xf32> to vector<8x1xf32>
    %213 = vector.shape_cast %212 : vector<8x1xf32> to vector<8x1xf32>
    %214 = vector.broadcast %213 : vector<8x1xf32> to vector<8x16xf32>
    %215 = vector.extract_strided_slice %3 {offsets = [0, 5], sizes = [8, 1], strides = [1, 1]} : vector<8x9xf32> to vector<8x1xf32>
    %216 = vector.shape_cast %215 : vector<8x1xf32> to vector<8x1xf32>
    %217 = vector.broadcast %216 : vector<8x1xf32> to vector<8x16xf32>
    %218 = vector.extract_strided_slice %3 {offsets = [0, 6], sizes = [8, 1], strides = [1, 1]} : vector<8x9xf32> to vector<8x1xf32>
    %219 = vector.shape_cast %218 : vector<8x1xf32> to vector<8x1xf32>
    %220 = vector.broadcast %219 : vector<8x1xf32> to vector<8x16xf32>
    %221 = vector.extract_strided_slice %3 {offsets = [0, 7], sizes = [8, 1], strides = [1, 1]} : vector<8x9xf32> to vector<8x1xf32>
    %222 = vector.shape_cast %221 : vector<8x1xf32> to vector<8x1xf32>
    %223 = vector.broadcast %222 : vector<8x1xf32> to vector<8x16xf32>
    %224 = vector.extract_strided_slice %3 {offsets = [0, 8], sizes = [8, 1], strides = [1, 1]} : vector<8x9xf32> to vector<8x1xf32>
    %225 = vector.shape_cast %224 : vector<8x1xf32> to vector<8x1xf32>
    %226 = vector.broadcast %225 : vector<8x1xf32> to vector<8x16xf32>
    %227 = vector.shape_cast %4 : vector<8x1xf32> to vector<8x1xf32>
    %228 = vector.broadcast %227 : vector<8x1xf32> to vector<8x16xf32>
    %229 = vector.extract_strided_slice %199 {offsets = [0, 0], sizes = [8, 16], strides = [1, 1]} : vector<8x24xf32> to vector<8x16xf32>
    %230 = arith.mulf %229, %202 : vector<8x16xf32>
    %231 = arith.addf %228, %230 : vector<8x16xf32>
    %232 = vector.extract_strided_slice %199 {offsets = [0, 1], sizes = [8, 16], strides = [1, 1]} : vector<8x24xf32> to vector<8x16xf32>
    %233 = arith.mulf %232, %205 : vector<8x16xf32>
    %234 = arith.addf %231, %233 : vector<8x16xf32>
    %235 = vector.extract_strided_slice %199 {offsets = [0, 2], sizes = [8, 16], strides = [1, 1]} : vector<8x24xf32> to vector<8x16xf32>
    %236 = arith.mulf %235, %208 : vector<8x16xf32>
    %237 = arith.addf %234, %236 : vector<8x16xf32>
    %238 = vector.extract_strided_slice %199 {offsets = [0, 3], sizes = [8, 16], strides = [1, 1]} : vector<8x24xf32> to vector<8x16xf32>
    %239 = arith.mulf %238, %211 : vector<8x16xf32>
    %240 = arith.addf %237, %239 : vector<8x16xf32>
    %241 = vector.extract_strided_slice %199 {offsets = [0, 4], sizes = [8, 16], strides = [1, 1]} : vector<8x24xf32> to vector<8x16xf32>
    %242 = arith.mulf %241, %214 : vector<8x16xf32>
    %243 = arith.addf %240, %242 : vector<8x16xf32>
    %244 = vector.extract_strided_slice %199 {offsets = [0, 5], sizes = [8, 16], strides = [1, 1]} : vector<8x24xf32> to vector<8x16xf32>
    %245 = arith.mulf %244, %217 : vector<8x16xf32>
    %246 = arith.addf %243, %245 : vector<8x16xf32>
    %247 = vector.extract_strided_slice %199 {offsets = [0, 6], sizes = [8, 16], strides = [1, 1]} : vector<8x24xf32> to vector<8x16xf32>
    %248 = arith.mulf %247, %220 : vector<8x16xf32>
    %249 = arith.addf %246, %248 : vector<8x16xf32>
    %250 = vector.extract_strided_slice %199 {offsets = [0, 7], sizes = [8, 16], strides = [1, 1]} : vector<8x24xf32> to vector<8x16xf32>
    %251 = arith.mulf %250, %223 : vector<8x16xf32>
    %252 = arith.addf %249, %251 : vector<8x16xf32>
    %253 = vector.extract_strided_slice %199 {offsets = [0, 8], sizes = [8, 16], strides = [1, 1]} : vector<8x24xf32> to vector<8x16xf32>
    %254 = arith.mulf %253, %226 : vector<8x16xf32>
    %255 = arith.addf %252, %254 : vector<8x16xf32>
    %256 = tpu.iota {dimensions = array<i32: 0>} : vector<8x1xi32>
    %cst_39 = arith.constant 0.000000e+00 : f32
    %257 = vector.broadcast %cst_39 : f32 to vector<8x1xf32>
    %cst_40 = arith.constant 0.000000e+00 : f32
    %258 = vector.broadcast %cst_40 : f32 to vector<8x1xf32>
    %259 = vector.extract_strided_slice %255 {offsets = [0, 0], sizes = [2, 16], strides = [1, 1]} : vector<8x16xf32> to vector<2x16xf32>
    %260 = vector.shape_cast %259 : vector<2x16xf32> to vector<1x2x16xf32>
    %cst_41 = arith.constant dense<0.000000e+00> : vector<1xf32>
    %261 = vector.multi_reduction <add>, %260, %cst_41 [1, 2] : vector<1x2x16xf32> to vector<1xf32>
    %262 = vector.shape_cast %261 : vector<1xf32> to vector<1x1x1xf32>
    %263 = vector.extract %262[0, 0, 0] : f32 from vector<1x1x1xf32>
    %cst_42 = arith.constant 3.125000e-02 : f32
    %264 = arith.mulf %263, %cst_42 : f32
    %265 = arith.mulf %259, %259 : vector<2x16xf32>
    %266 = vector.shape_cast %265 : vector<2x16xf32> to vector<1x2x16xf32>
    %cst_43 = arith.constant dense<0.000000e+00> : vector<1xf32>
    %267 = vector.multi_reduction <add>, %266, %cst_43 [1, 2] : vector<1x2x16xf32> to vector<1xf32>
    %268 = vector.shape_cast %267 : vector<1xf32> to vector<1x1x1xf32>
    %269 = vector.extract %268[0, 0, 0] : f32 from vector<1x1x1xf32>
    %cst_44 = arith.constant 3.125000e-02 : f32
    %270 = arith.mulf %269, %cst_44 : f32
    %271 = arith.mulf %264, %264 : f32
    %272 = arith.subf %270, %271 : f32
    %cst_45 = arith.constant 9.99999974E-6 : f32
    %273 = arith.addf %272, %cst_45 : f32
    %274 = math.rsqrt %273 : f32
    %c0_i32_46 = arith.constant 0 : i32
    %275 = vector.broadcast %c0_i32_46 : i32 to vector<8x1xi32>
    %276 = arith.cmpi sge, %256, %275 : vector<8x1xi32>
    %c2_i32_47 = arith.constant 2 : i32
    %277 = vector.broadcast %c2_i32_47 : i32 to vector<8x1xi32>
    %278 = arith.cmpi slt, %256, %277 : vector<8x1xi32>
    %279 = arith.andi %276, %278 : vector<8x1xi1>
    %280 = vector.broadcast %264 : f32 to vector<8x1xf32>
    %281 = arith.select %279, %280, %257 : vector<8x1xi1>, vector<8x1xf32>
    %282 = vector.broadcast %274 : f32 to vector<8x1xf32>
    %283 = arith.select %279, %282, %258 : vector<8x1xi1>, vector<8x1xf32>
    %284 = vector.extract_strided_slice %255 {offsets = [2, 0], sizes = [2, 16], strides = [1, 1]} : vector<8x16xf32> to vector<2x16xf32>
    %285 = vector.shape_cast %284 : vector<2x16xf32> to vector<1x2x16xf32>
    %cst_48 = arith.constant dense<0.000000e+00> : vector<1xf32>
    %286 = vector.multi_reduction <add>, %285, %cst_48 [1, 2] : vector<1x2x16xf32> to vector<1xf32>
    %287 = vector.shape_cast %286 : vector<1xf32> to vector<1x1x1xf32>
    %288 = vector.extract %287[0, 0, 0] : f32 from vector<1x1x1xf32>
    %cst_49 = arith.constant 3.125000e-02 : f32
    %289 = arith.mulf %288, %cst_49 : f32
    %290 = arith.mulf %284, %284 : vector<2x16xf32>
    %291 = vector.shape_cast %290 : vector<2x16xf32> to vector<1x2x16xf32>
    %cst_50 = arith.constant dense<0.000000e+00> : vector<1xf32>
    %292 = vector.multi_reduction <add>, %291, %cst_50 [1, 2] : vector<1x2x16xf32> to vector<1xf32>
    %293 = vector.shape_cast %292 : vector<1xf32> to vector<1x1x1xf32>
    %294 = vector.extract %293[0, 0, 0] : f32 from vector<1x1x1xf32>
    %cst_51 = arith.constant 3.125000e-02 : f32
    %295 = arith.mulf %294, %cst_51 : f32
    %296 = arith.mulf %289, %289 : f32
    %297 = arith.subf %295, %296 : f32
    %cst_52 = arith.constant 9.99999974E-6 : f32
    %298 = arith.addf %297, %cst_52 : f32
    %299 = math.rsqrt %298 : f32
    %c2_i32_53 = arith.constant 2 : i32
    %300 = vector.broadcast %c2_i32_53 : i32 to vector<8x1xi32>
    %301 = arith.cmpi sge, %256, %300 : vector<8x1xi32>
    %c4_i32_54 = arith.constant 4 : i32
    %302 = vector.broadcast %c4_i32_54 : i32 to vector<8x1xi32>
    %303 = arith.cmpi slt, %256, %302 : vector<8x1xi32>
    %304 = arith.andi %301, %303 : vector<8x1xi1>
    %305 = vector.broadcast %289 : f32 to vector<8x1xf32>
    %306 = arith.select %304, %305, %281 : vector<8x1xi1>, vector<8x1xf32>
    %307 = vector.broadcast %299 : f32 to vector<8x1xf32>
    %308 = arith.select %304, %307, %283 : vector<8x1xi1>, vector<8x1xf32>
    %309 = vector.extract_strided_slice %255 {offsets = [4, 0], sizes = [2, 16], strides = [1, 1]} : vector<8x16xf32> to vector<2x16xf32>
    %310 = vector.shape_cast %309 : vector<2x16xf32> to vector<1x2x16xf32>
    %cst_55 = arith.constant dense<0.000000e+00> : vector<1xf32>
    %311 = vector.multi_reduction <add>, %310, %cst_55 [1, 2] : vector<1x2x16xf32> to vector<1xf32>
    %312 = vector.shape_cast %311 : vector<1xf32> to vector<1x1x1xf32>
    %313 = vector.extract %312[0, 0, 0] : f32 from vector<1x1x1xf32>
    %cst_56 = arith.constant 3.125000e-02 : f32
    %314 = arith.mulf %313, %cst_56 : f32
    %315 = arith.mulf %309, %309 : vector<2x16xf32>
    %316 = vector.shape_cast %315 : vector<2x16xf32> to vector<1x2x16xf32>
    %cst_57 = arith.constant dense<0.000000e+00> : vector<1xf32>
    %317 = vector.multi_reduction <add>, %316, %cst_57 [1, 2] : vector<1x2x16xf32> to vector<1xf32>
    %318 = vector.shape_cast %317 : vector<1xf32> to vector<1x1x1xf32>
    %319 = vector.extract %318[0, 0, 0] : f32 from vector<1x1x1xf32>
    %cst_58 = arith.constant 3.125000e-02 : f32
    %320 = arith.mulf %319, %cst_58 : f32
    %321 = arith.mulf %314, %314 : f32
    %322 = arith.subf %320, %321 : f32
    %cst_59 = arith.constant 9.99999974E-6 : f32
    %323 = arith.addf %322, %cst_59 : f32
    %324 = math.rsqrt %323 : f32
    %c4_i32_60 = arith.constant 4 : i32
    %325 = vector.broadcast %c4_i32_60 : i32 to vector<8x1xi32>
    %326 = arith.cmpi sge, %256, %325 : vector<8x1xi32>
    %c6_i32_61 = arith.constant 6 : i32
    %327 = vector.broadcast %c6_i32_61 : i32 to vector<8x1xi32>
    %328 = arith.cmpi slt, %256, %327 : vector<8x1xi32>
    %329 = arith.andi %326, %328 : vector<8x1xi1>
    %330 = vector.broadcast %314 : f32 to vector<8x1xf32>
    %331 = arith.select %329, %330, %306 : vector<8x1xi1>, vector<8x1xf32>
    %332 = vector.broadcast %324 : f32 to vector<8x1xf32>
    %333 = arith.select %329, %332, %308 : vector<8x1xi1>, vector<8x1xf32>
    %334 = vector.extract_strided_slice %255 {offsets = [6, 0], sizes = [2, 16], strides = [1, 1]} : vector<8x16xf32> to vector<2x16xf32>
    %335 = vector.shape_cast %334 : vector<2x16xf32> to vector<1x2x16xf32>
    %cst_62 = arith.constant dense<0.000000e+00> : vector<1xf32>
    %336 = vector.multi_reduction <add>, %335, %cst_62 [1, 2] : vector<1x2x16xf32> to vector<1xf32>
    %337 = vector.shape_cast %336 : vector<1xf32> to vector<1x1x1xf32>
    %338 = vector.extract %337[0, 0, 0] : f32 from vector<1x1x1xf32>
    %cst_63 = arith.constant 3.125000e-02 : f32
    %339 = arith.mulf %338, %cst_63 : f32
    %340 = arith.mulf %334, %334 : vector<2x16xf32>
    %341 = vector.shape_cast %340 : vector<2x16xf32> to vector<1x2x16xf32>
    %cst_64 = arith.constant dense<0.000000e+00> : vector<1xf32>
    %342 = vector.multi_reduction <add>, %341, %cst_64 [1, 2] : vector<1x2x16xf32> to vector<1xf32>
    %343 = vector.shape_cast %342 : vector<1xf32> to vector<1x1x1xf32>
    %344 = vector.extract %343[0, 0, 0] : f32 from vector<1x1x1xf32>
    %cst_65 = arith.constant 3.125000e-02 : f32
    %345 = arith.mulf %344, %cst_65 : f32
    %346 = arith.mulf %339, %339 : f32
    %347 = arith.subf %345, %346 : f32
    %cst_66 = arith.constant 9.99999974E-6 : f32
    %348 = arith.addf %347, %cst_66 : f32
    %349 = math.rsqrt %348 : f32
    %c6_i32_67 = arith.constant 6 : i32
    %350 = vector.broadcast %c6_i32_67 : i32 to vector<8x1xi32>
    %351 = arith.cmpi sge, %256, %350 : vector<8x1xi32>
    %c8_i32_68 = arith.constant 8 : i32
    %352 = vector.broadcast %c8_i32_68 : i32 to vector<8x1xi32>
    %353 = arith.cmpi slt, %256, %352 : vector<8x1xi32>
    %354 = arith.andi %351, %353 : vector<8x1xi1>
    %355 = vector.broadcast %339 : f32 to vector<8x1xf32>
    %356 = arith.select %354, %355, %331 : vector<8x1xi1>, vector<8x1xf32>
    %357 = vector.broadcast %349 : f32 to vector<8x1xf32>
    %358 = arith.select %354, %357, %333 : vector<8x1xi1>, vector<8x1xf32>
    %359 = vector.broadcast %356 : vector<8x1xf32> to vector<8x16xf32>
    %360 = arith.subf %255, %359 : vector<8x16xf32>
    %361 = vector.broadcast %358 : vector<8x1xf32> to vector<8x16xf32>
    %362 = arith.mulf %360, %361 : vector<8x16xf32>
    %363 = vector.broadcast %193 : vector<8x1xf32> to vector<8x16xf32>
    %364 = arith.mulf %362, %363 : vector<8x16xf32>
    %365 = vector.broadcast %194 : vector<8x1xf32> to vector<8x16xf32>
    %366 = arith.addf %364, %365 : vector<8x16xf32>
    %367 = arith.negf %366 : vector<8x16xf32>
    %368 = math.exp %367 : vector<8x16xf32>
    %cst_69 = arith.constant 1.000000e+00 : f32
    %369 = vector.broadcast %cst_69 : f32 to vector<8x16xf32>
    %370 = arith.addf %369, %368 : vector<8x16xf32>
    %371 = arith.divf %369, %370 : vector<8x16xf32>
    %c0_70 = arith.constant 0 : index
    %c0_71 = arith.constant 0 : index
    %c0_72 = arith.constant 0 : index
    %372 = vector.load %arg4[%c0_70, %c0_71, %c0_72] : memref<1x8x16xf32, #tpu.memory_space<vmem>>, vector<1x8x16xf32>
    %373 = vector.shape_cast %372 : vector<1x8x16xf32> to vector<8x16xf32>
    %374 = vector.shape_cast %371 : vector<8x16xf32> to vector<1x8x16xf32>
    tpu.vector_store %arg4[%c0_70, %c0_71, %c0_72], %374 {strides = array<i32>} : memref<1x8x16xf32, #tpu.memory_space<vmem>>, vector<1x8x16xf32>,
    return
  }
  func.func @transform_0(%arg0: i32) -> (i32, i32, i32, i32) {
    %c0_i32 = arith.constant 0 : i32
    %c0_i32_0 = arith.constant 0 : i32
    %c0_i32_1 = arith.constant 0 : i32
    %c0_i32_2 = arith.constant 0 : i32
    return %arg0, %c0_i32, %c0_i32_0, %c0_i32_1 : i32, i32, i32, i32
  }
  func.func @transform_1(%arg0: i32) -> (i32, i32) {
    %c0_i32 = arith.constant 0 : i32
    %c0_i32_0 = arith.constant 0 : i32
    %c0_i32_1 = arith.constant 0 : i32
    return %c0_i32, %c0_i32_0 : i32, i32
  }
  func.func @transform_2(%arg0: i32) -> (i32, i32, i32) {
    %c0_i32 = arith.constant 0 : i32
    %c0_i32_0 = arith.constant 0 : i32
    %c0_i32_1 = arith.constant 0 : i32
    return %arg0, %c0_i32, %c0_i32_0 : i32, i32, i32
  }
  func.func @transform_3(%arg0: i32) -> (i32, i32, i32) {
    %c0_i32 = arith.constant 0 : i32
    %c0_i32_0 = arith.constant 0 : i32
    %c0_i32_1 = arith.constant 0 : i32
    return %arg0, %c0_i32, %c0_i32_0 : i32, i32, i32
  }
}

</mosaic_0001>

<llo_original>
// kernel: tpu_custom_call.1
$region0: #{tpu_custom_call.1}
  #allocation0 [shape = 'u32[]', space=smem, size = 0x4, offset = 0x4, fixed_abs, tag = 'smem constant byte address 0x4 - core index']
  #allocation1 [shape = 'u32[144,128]{1,0:T(1,128)}', space=vmem, size = 0x12000, scoped, tag = 'internal scratch']
  %s0 = inlined_call_operand.hbm [shape: f32[2,8,16,16], index: 0, kind: input, shape index: {}]
  %s1 = inlined_call_operand.hbm [shape: f32[8,16], index: 1, kind: input, shape index: {}]
  %s2 = inlined_call_operand.hbm [shape: f32[2,8,16], index: 2, kind: output, shape index: {0}]
  %s3 = inlined_call_operand.hbm [shape: f32[2,8,16], index: 3, kind: output, shape index: {1}]
  %4 = xla_tuple %s2, %s3
  %s5 = sld [smem:[#allocation0]]
  $region57: #{tpu_custom_call.1} parent=0
    _
  %s7 = ssub.s32 1, %s5
  %s8 = scalar_select 0, %s7, %s5
  $region1: #{tpu_custom_call.1} parent=0
    #allocation2 [shape = 'u8[131072]{0}', space=vmem, size = 0x20000, scoped, tag = 'input window, operand 0']
    #allocation3 [shape = 's32[2]{0}', space=sflag, size = 0x8, scoped, tag = 'scoped memory for tpu_custom_call.1']
    #allocation4 [shape = 's32[2]{0}', space=sflag, size = 0x8, scoped, tag = 'scoped memory for tpu_custom_call.1']
    #allocation5 [shape = 'u8[4096]{0}', space=vmem, size = 0x1000, scoped, tag = 'input window, operand 1, single buffered']
    #allocation6 [shape = 's32[1]{0}', space=sflag, size = 0x4, scoped, tag = 'scoped memory for tpu_custom_call.1']
    #allocation7 [shape = 'u8[8192]{0}', space=vmem, size = 0x2000, scoped, tag = 'output window, operand 0']
    #allocation8 [shape = 'u8[8192]{0}', space=vmem, size = 0x2000, scoped, tag = 'output window, operand 1']
    #allocation9 [shape = 's32[2]{0}', space=sflag, size = 0x8, scoped, tag = 'scoped memory for tpu_custom_call.1']
    %9 = vsyncpa [#allocation3], 0
    %s10 = scalar_lea.sflag [#allocation3], 1
    %11 = vsyncpa %s10, 0
    %12 = vsyncpa [#allocation6], 0
    %13 = vsyncpa [#allocation4], 0
    %s14 = scalar_lea.sflag [#allocation4], 1
    %15 = vsyncpa %s14, 0
    %16 = vsyncpa [#allocation9], 0
    %s17 = scalar_lea.sflag [#allocation9], 1
    %18 = vsyncpa %s17, 0
    loop: start=0, step=1, limit=4
    $region2: #{tpu_custom_call.1} parent=1 // loop_pre_header
      _
    $region3: #{tpu_custom_call.1} parent=1 // loop_header
      %s20 = sphi 0, %s24
      %p21 = scmp.ge.s32.totalorder %s20, 4
      %s30 = sphi 0, %s32
      %s33 = sphi 0, %s30
      %s34 = sphi 0, %s33
      %s50 = sphi 0, %s34
      %s54 = sphi 0, %s54
      %s56 = sphi 0, %s54
      %s57 = sphi 0, %s56
      %s71 = sphi 0, %s57
      %s77 = sphi 0, %s79
      %s80 = sphi 0, %s77
      %s81 = sphi 0, %s80
      %s97 = sphi 0, %s81
      %s103 = sphi 0, %s105
      %s106 = sphi 0, %s103
      %s107 = sphi 0, %s106
      %s123 = sphi 0, %s107
    $region4: #{tpu_custom_call.1} parent=1 // loop_header_branch
      %23 = sbr.rel (%p21) target = $region8
    $region5: #{tpu_custom_call.1} parent=1 // loop_body
      %s25 = ssub.s32 %s20, 1
      %s26 = ssub.s32 %s20, 2
      %s27 = sadd.s32 %s20, 1
      %s28 = ssub.s32 %s20, %s27
      %p29 = scmp.eq.s32.totalorder %s28, 0
      %s31 = sadd.s32 %s30, 1
      %s32 = scalar_select %p29, %s30, %s31
      %p35 = pneg %p29
      %p36 = scmp.eq.s32.totalorder %s20, 1
      %p37 = por %p35, %p36
      %p38 = scmp.ne.s32.totalorder %s30, %s33
      %p39 = scmp.eq.s32.totalorder %s20, 0
      %p40 = por %p38, %p39
      %p41 = scmp.ne.s32.totalorder %s30, %s33
      %p42 = scmp.eq.s32.totalorder %s25, 1
      %p43 = por %p41, %p42
      %p44 = scmp.ne.s32.totalorder %s33, %s34
      %p45 = scmp.eq.s32.totalorder %s25, 0
      %p46 = por %p44, %p45
      %p47 = scmp.ne.s32.totalorder %s33, %s34
      %p48 = scmp.eq.s32.totalorder %s26, 1
      %p49 = por %p47, %p48
      %p51 = scmp.ne.s32.totalorder %s34, %s50
      %p52 = scmp.eq.s32.totalorder %s26, 0
      %p53 = por %p51, %p52
      %s55 = sadd.s32 %s54, 1
      %p58 = scmp.eq.s32.totalorder %s20, 1
      %p59 = scmp.ne.s32.totalorder %s54, %s56
      %p60 = scmp.eq.s32.totalorder %s20, 0
      %p61 = por %p59, %p60
      %p62 = scmp.ne.s32.totalorder %s54, %s56
      %p63 = scmp.eq.s32.totalorder %s25, 1
      %p64 = por %p62, %p63
      %p65 = scmp.ne.s32.totalorder %s56, %s57
      %p66 = scmp.eq.s32.totalorder %s25, 0
      %p67 = por %p65, %p66
      %p68 = scmp.ne.s32.totalorder %s56, %s57
      %p69 = scmp.eq.s32.totalorder %s26, 1
      %p70 = por %p68, %p69
      %p72 = scmp.ne.s32.totalorder %s57, %s71
      %p73 = scmp.eq.s32.totalorder %s26, 0
      %p74 = por %p72, %p73
      %s75 = ssub.s32 %s20, %s27
      %p76 = scmp.eq.s32.totalorder %s75, 0
      %s78 = sadd.s32 %s77, 1
      %s79 = scalar_select %p76, %s77, %s78
      %p82 = pneg %p76
      %p83 = scmp.eq.s32.totalorder %s20, 1
      %p84 = por %p82, %p83
      %p85 = scmp.ne.s32.totalorder %s77, %s80
      %p86 = scmp.eq.s32.totalorder %s20, 0
      %p87 = por %p85, %p86
      %p88 = scmp.ne.s32.totalorder %s77, %s80
      %p89 = scmp.eq.s32.totalorder %s25, 1
      %p90 = por %p88, %p89
      %p91 = scmp.ne.s32.totalorder %s80, %s81
      %p92 = scmp.eq.s32.totalorder %s25, 0
      %p93 = por %p91, %p92
      %p94 = scmp.ne.s32.totalorder %s80, %s81
      %p95 = scmp.eq.s32.totalorder %s26, 1
      %p96 = por %p94, %p95
      %p98 = scmp.ne.s32.totalorder %s81, %s97
      %p99 = scmp.eq.s32.totalorder %s26, 0
      %p100 = por %p98, %p99
      %s101 = ssub.s32 %s20, %s27
      %p102 = scmp.eq.s32.totalorder %s101, 0
      %s104 = sadd.s32 %s103, 1
      %s105 = scalar_select %p102, %s103, %s104
      %p108 = pneg %p102
      %p109 = scmp.eq.s32.totalorder %s20, 1
      %p110 = por %p108, %p109
      %p111 = scmp.ne.s32.totalorder %s103, %s106
      %p112 = scmp.eq.s32.totalorder %s20, 0
      %p113 = por %p111, %p112
      %p114 = scmp.ne.s32.totalorder %s103, %s106
      %p115 = scmp.eq.s32.totalorder %s25, 1
      %p116 = por %p114, %p115
      %p117 = scmp.ne.s32.totalorder %s106, %s107
      %p118 = scmp.eq.s32.totalorder %s25, 0
      %p119 = por %p117, %p118
      %p120 = scmp.ne.s32.totalorder %s106, %s107
      %p121 = scmp.eq.s32.totalorder %s26, 1
      %p122 = por %p120, %p121
      %p124 = scmp.ne.s32.totalorder %s107, %s123
      %p125 = scmp.eq.s32.totalorder %s26, 0
      %p126 = por %p124, %p125
      %p127 = scmp.le.s32.totalorder 1, %s20
      %p128 = scmp.lt.s32.totalorder %s20, 3
      %p129 = pnand %p127, %p128
      %p130 = pneg %p129
      // Predicated region
      $region9: #{tpu_custom_call.1} parent=5 // pred_check
        _
      $region10: #{tpu_custom_call.1} parent=5 // pred_check_branch
        %132 = sbr.rel (%p129) target = $region12
      $region11: #{tpu_custom_call.1} parent=5 // pred_region
        %s133 = ssub.s32 %s20, 1
        // Predicated region
        $region13: #{tpu_custom_call.1} parent=11 // pred_check
          %p134 = pneg %p67
        $region14: #{tpu_custom_call.1} parent=11 // pred_check_branch
          %136 = sbr.rel (%p134) target = $region16
        $region15: #{tpu_custom_call.1} parent=11 // pred_region
          %s138 = ssub.s32 128, 128
          %139 = vsyncadd [#allocation6], %s138
          %s141 = sshll.u32 [#allocation5], 4
          %s142 = int_to_ptr.vmem [resolvable:$true] %s141
          %144 = dma.hbm_to_vmem [thread:$0]  %s1, 128, %s142, [#allocation6]
        $region16: #{tpu_custom_call.1} parent=11 // pred_fallthru
          _
      $region12: #{tpu_custom_call.1} parent=5 // pred_fallthru
        _
      %p145 = scmp.lt.s32.totalorder %s20, 2
      // Predicated region
      $region17: #{tpu_custom_call.1} parent=5 // pred_check
        %p146 = pneg %p145
      $region18: #{tpu_custom_call.1} parent=5 // pred_check_branch
        %148 = sbr.rel (%p146) target = $region20
      $region19: #{tpu_custom_call.1} parent=5 // pred_region
        // Predicated region
        $region21: #{tpu_custom_call.1} parent=19 // pred_check
          %p149 = pneg %p40
        $region22: #{tpu_custom_call.1} parent=19 // pred_check_branch
          %151 = sbr.rel (%p149) target = $region24
        $region23: #{tpu_custom_call.1} parent=19 // pred_region
          %s152 = sand.u32 %s30, 1
          %s153 = scalar_lea.sflag [#allocation3], %s152
          %s154 = sand.u32 %s30, 1
          %s155 = smul.addr %s154, 128
          %s156 = scalar_lea.vmem [#allocation2], %s155
          %s158 = ssub.s32 2048, 2048
          %159 = vsyncadd %s153, %s158
          %s160 = smul.addr %s20, 16
          %s161 = smul.addr %s160, 128
          %s162 = scalar_lea.hbm %s0, %s161
          %s163 = sshll.u32 %s156, 4
          %s164 = int_to_ptr.vmem [resolvable:$true] %s163
          %169 = dma.hbm_to_vmem [thread:$0]  %s162, 2048, %s164, %s153, 128, 128, 8
        $region24: #{tpu_custom_call.1} parent=19 // pred_fallthru
          _
      $region20: #{tpu_custom_call.1} parent=5 // pred_fallthru
        _
      %p170 = scmp.le.s32.totalorder 1, %s20
      %p171 = scmp.lt.s32.totalorder %s20, 3
      %p172 = pnand %p170, %p171
      %p173 = pneg %p172
      // Predicated region
      $region25: #{tpu_custom_call.1} parent=5 // pred_check
        _
      $region26: #{tpu_custom_call.1} parent=5 // pred_check_branch
        %175 = sbr.rel (%p172) target = $region28
      $region27: #{tpu_custom_call.1} parent=5 // pred_region
        %s176 = ssub.s32 %s20, 1
        %s177 = sand.u32 %s33, 1
        %s178 = scalar_lea.sflag [#allocation3], %s177
        %s179 = sand.u32 %s33, 1
        %s180 = smul.addr %s179, 128
        %s181 = scalar_lea.vmem [#allocation2], %s180
        // Predicated region
        $region29: #{tpu_custom_call.1} parent=27 // pred_check
          %p182 = pneg %p46
        $region30: #{tpu_custom_call.1} parent=27 // pred_check_branch
          %184 = sbr.rel (%p182) target = $region32
        $region31: #{tpu_custom_call.1} parent=27 // pred_region
          %185 = dma.done %s178, 2048
        $region32: #{tpu_custom_call.1} parent=27 // pred_fallthru
          _
        // Predicated region
        $region33: #{tpu_custom_call.1} parent=27 // pred_check
          %p186 = pneg %p67
        $region34: #{tpu_custom_call.1} parent=27 // pred_check_branch
          %188 = sbr.rel (%p186) target = $region36
        $region35: #{tpu_custom_call.1} parent=27 // pred_region
          %189 = dma.done [#allocation6], 128
        $region36: #{tpu_custom_call.1} parent=27 // pred_fallthru
          _
        %s190 = sand.u32 %s33, 1
        %s191 = scalar_lea.sflag [#allocation3], %s190
        %s192 = sand.u32 %s33, 1
        %s193 = smul.addr %s192, 128
        %s194 = scalar_lea.vmem [#allocation2], %s193
        %p195 = pneg %p46
        %p196 = pneg %p43
        %p197 = pneg %p67
        %p198 = pneg %p64
        %p199 = pneg %p93
        %p200 = pneg %p90
        %s201 = sand.u32 %s80, 1
        %s202 = scalar_lea.sflag [#allocation4], %s201
        %s203 = sand.u32 %s80, 1
        %s204 = smul.addr %s203, 8
        %s205 = scalar_lea.vmem [#allocation7], %s204
        %p206 = pneg %p119
        %p207 = pneg %p116
        %s208 = sand.u32 %s106, 1
        %s209 = scalar_lea.sflag [#allocation9], %s208
        %s210 = sand.u32 %s106, 1
        %s211 = smul.addr %s210, 8
        %s212 = scalar_lea.vmem [#allocation8], %s211
        %v213 = vld [vmem:[%s181] sm:$0xff]
        %v214 = vld [vmem:[%s181 + $0x8] sm:$0xff]
        %v215 = vld [vmem:[%s181 + $0x10] sm:$0xff]
        %v216 = vld [vmem:[%s181 + $0x18] sm:$0xff]
        %v217 = vld [vmem:[%s181 + $0x20] sm:$0xff]
        %v218 = vld [vmem:[%s181 + $0x28] sm:$0xff]
        %v219 = vld [vmem:[%s181 + $0x30] sm:$0xff]
        %v220 = vld [vmem:[%s181 + $0x38] sm:$0xff]
        %v221 = vld [vmem:[%s181 + $0x40] sm:$0xff]
        %v222 = vld [vmem:[%s181 + $0x48] sm:$0xff]
        %v223 = vld [vmem:[%s181 + $0x50] sm:$0xff]
        %v224 = vld [vmem:[%s181 + $0x58] sm:$0xff]
        %v225 = vld [vmem:[%s181 + $0x60] sm:$0xff]
        %v226 = vld [vmem:[%s181 + $0x68] sm:$0xff]
        %v227 = vld [vmem:[%s181 + $0x70] sm:$0xff]
        %v228 = vld [vmem:[%s181 + $0x78] sm:$0xff]
        %v229 = vld [vmem:[#allocation5] sm:$0xff]
        %vm230 = vcmask 130048
        %v231 = vsel %vm230, %v213, 0.0
        %232 = vadd.xlane.f32.xlu0 %v231
        %v233 = vpop.xlane.xlu0 %232
        %v234 = vsel %vm230, %v214, 0.0
        %235 = vadd.xlane.f32.xlu0 %v234
        %v236 = vpop.xlane.xlu0 %235
        %v237 = vsel %vm230, %v215, 0.0
        %238 = vadd.xlane.f32.xlu0 %v237
        %v239 = vpop.xlane.xlu0 %238
        %v240 = vsel %vm230, %v216, 0.0
        %241 = vadd.xlane.f32.xlu0 %v240
        %v242 = vpop.xlane.xlu0 %241
        %v243 = vsel %vm230, %v217, 0.0
        %244 = vadd.xlane.f32.xlu0 %v243
        %v245 = vpop.xlane.xlu0 %244
        %v246 = vsel %vm230, %v218, 0.0
        %247 = vadd.xlane.f32.xlu0 %v246
        %v248 = vpop.xlane.xlu0 %247
        %v249 = vsel %vm230, %v219, 0.0
        %250 = vadd.xlane.f32.xlu0 %v249
        %v251 = vpop.xlane.xlu0 %250
        %v252 = vsel %vm230, %v220, 0.0
        %253 = vadd.xlane.f32.xlu0 %v252
        %v254 = vpop.xlane.xlu0 %253
        %v255 = vsel %vm230, %v221, 0.0
        %256 = vadd.xlane.f32.xlu0 %v255
        %v257 = vpop.xlane.xlu0 %256
        %v258 = vsel %vm230, %v222, 0.0
        %259 = vadd.xlane.f32.xlu0 %v258
        %v260 = vpop.xlane.xlu0 %259
        %v261 = vsel %vm230, %v223, 0.0
        %262 = vadd.xlane.f32.xlu0 %v261
        %v263 = vpop.xlane.xlu0 %262
        %v264 = vsel %vm230, %v224, 0.0
        %265 = vadd.xlane.f32.xlu0 %v264
        %v266 = vpop.xlane.xlu0 %265
        %v267 = vsel %vm230, %v225, 0.0
        %268 = vadd.xlane.f32.xlu0 %v267
        %v269 = vpop.xlane.xlu0 %268
        %v270 = vsel %vm230, %v226, 0.0
        %271 = vadd.xlane.f32.xlu0 %v270
        %v272 = vpop.xlane.xlu0 %271
        %v273 = vsel %vm230, %v227, 0.0
        %274 = vadd.xlane.f32.xlu0 %v273
        %v275 = vpop.xlane.xlu0 %274
        %v276 = vsel %vm230, %v228, 0.0
        %277 = vadd.xlane.f32.xlu0 %v276
        %v278 = vpop.xlane.xlu0 %277
        %v279 = vrcp.pop 16.0
        %v280 = vmul.f32 %v233, %v279
        %v281 = vmul.f32 %v236, %v279
        %v282 = vmul.f32 %v239, %v279
        %v283 = vmul.f32 %v242, %v279
        %v284 = vmul.f32 %v245, %v279
        %v285 = vmul.f32 %v248, %v279
        %v286 = vmul.f32 %v251, %v279
        %v287 = vmul.f32 %v254, %v279
        %v288 = vmul.f32 %v257, %v279
        %v289 = vmul.f32 %v260, %v279
        %v290 = vmul.f32 %v263, %v279
        %v291 = vmul.f32 %v266, %v279
        %v292 = vmul.f32 %v269, %v279
        %v293 = vmul.f32 %v272, %v279
        %v294 = vmul.f32 %v275, %v279
        %v295 = vmul.f32 %v278, %v279
        %v296 = vadd.f32 %v231, %v234
        %v297 = vrot.slane %v296, 4
        %v298 = vadd.f32 %v296, %v297
        %v299 = vrot.slane %v298, 2
        %v300 = vadd.f32 %v298, %v299
        %v301 = vrot.slane %v300, 1
        %v302 = vadd.f32 %v300, %v301
        %v303 = vadd.f32 %v237, %v240
        %v304 = vrot.slane %v303, 4
        %v305 = vadd.f32 %v303, %v304
        %v306 = vrot.slane %v305, 2
        %v307 = vadd.f32 %v305, %v306
        %v308 = vrot.slane %v307, 1
        %v309 = vadd.f32 %v307, %v308
        %v310 = vadd.f32 %v243, %v246
        %v311 = vrot.slane %v310, 4
        %v312 = vadd.f32 %v310, %v311
        %v313 = vrot.slane %v312, 2
        %v314 = vadd.f32 %v312, %v313
        %v315 = vrot.slane %v314, 1
        %v316 = vadd.f32 %v314, %v315
        %v317 = vadd.f32 %v249, %v252
        %v318 = vrot.slane %v317, 4
        %v319 = vadd.f32 %v317, %v318
        %v320 = vrot.slane %v319, 2
        %v321 = vadd.f32 %v319, %v320
        %v322 = vrot.slane %v321, 1
        %v323 = vadd.f32 %v321, %v322
        %v324 = vadd.f32 %v255, %v258
        %v325 = vrot.slane %v324, 4
        %v326 = vadd.f32 %v324, %v325
        %v327 = vrot.slane %v326, 2
        %v328 = vadd.f32 %v326, %v327
        %v329 = vrot.slane %v328, 1
        %v330 = vadd.f32 %v328, %v329
        %v331 = vadd.f32 %v261, %v264
        %v332 = vrot.slane %v331, 4
        %v333 = vadd.f32 %v331, %v332
        %v334 = vrot.slane %v333, 2
        %v335 = vadd.f32 %v333, %v334
        %v336 = vrot.slane %v335, 1
        %v337 = vadd.f32 %v335, %v336
        %v338 = vadd.f32 %v267, %v270
        %v339 = vrot.slane %v338, 4
        %v340 = vadd.f32 %v338, %v339
        %v341 = vrot.slane %v340, 2
        %v342 = vadd.f32 %v340, %v341
        %v343 = vrot.slane %v342, 1
        %v344 = vadd.f32 %v342, %v343
        %v345 = vadd.f32 %v273, %v276
        %v346 = vrot.slane %v345, 4
        %v347 = vadd.f32 %v345, %v346
        %v348 = vrot.slane %v347, 2
        %v349 = vadd.f32 %v347, %v348
        %v350 = vrot.slane %v349, 1
        %v351 = vadd.f32 %v349, %v350
        %v352 = vmul.f32 %v302, %v279
        %v353 = vmul.f32 %v309, %v279
        %v354 = vmul.f32 %v316, %v279
        %v355 = vmul.f32 %v323, %v279
        %v356 = vmul.f32 %v330, %v279
        %v357 = vmul.f32 %v337, %v279
        %v358 = vmul.f32 %v344, %v279
        %v359 = vmul.f32 %v351, %v279
        %v376 = vlaneseq
        %v377 = vand.u32 %v376, 127
        %v378 = vadd.s32 %v377, 4294967292
        %v379 = vlaneseq
        %v380 = vshrl.u32 %v379, 7
        %v381 = vsub.s32 %v378, %v380
        %v382 = vrot.slane %v280, %v381
        %v383 = vadd.s32 %v377, 4294967284
        %v384 = vlaneseq
        %v385 = vshrl.u32 %v384, 7
        %v386 = vsub.s32 %v383, %v385
        %v387 = vrot.slane %v281, %v386
        %vm388 = vcmask 162912
        %v389 = vsel %vm388, %v387, %v382
        %v390 = vlaneseq
        %v391 = vshrl.u32 %v390, 7
        %v392 = vsub.s32 %v378, %v391
        %v393 = vrot.slane %v282, %v392
        %v394 = vlaneseq
        %v395 = vshrl.u32 %v394, 7
        %v396 = vsub.s32 %v383, %v395
        %v397 = vrot.slane %v283, %v396
        %v398 = vsel %vm388, %v397, %v393
        %v399 = vlaneseq
        %v400 = vshrl.u32 %v399, 7
        %v401 = vsub.s32 %v378, %v400
        %v402 = vrot.slane %v284, %v401
        %v403 = vlaneseq
        %v404 = vshrl.u32 %v403, 7
        %v405 = vsub.s32 %v383, %v404
        %v406 = vrot.slane %v285, %v405
        %v407 = vsel %vm388, %v406, %v402
        %v408 = vlaneseq
        %v409 = vshrl.u32 %v408, 7
        %v410 = vsub.s32 %v378, %v409
        %v411 = vrot.slane %v286, %v410
        %v412 = vlaneseq
        %v413 = vshrl.u32 %v412, 7
        %v414 = vsub.s32 %v383, %v413
        %v415 = vrot.slane %v287, %v414
        %v416 = vsel %vm388, %v415, %v411
        %v417 = vlaneseq
        %v418 = vshrl.u32 %v417, 7
        %v419 = vsub.s32 %v378, %v418
        %v420 = vrot.slane %v288, %v419
        %v421 = vlaneseq
        %v422 = vshrl.u32 %v421, 7
        %v423 = vsub.s32 %v383, %v422
        %v424 = vrot.slane %v289, %v423
        %v425 = vsel %vm388, %v424, %v420
        %v426 = vlaneseq
        %v427 = vshrl.u32 %v426, 7
        %v428 = vsub.s32 %v378, %v427
        %v429 = vrot.slane %v290, %v428
        %v430 = vlaneseq
        %v431 = vshrl.u32 %v430, 7
        %v432 = vsub.s32 %v383, %v431
        %v433 = vrot.slane %v291, %v432
        %v434 = vsel %vm388, %v433, %v429
        %v435 = vlaneseq
        %v436 = vshrl.u32 %v435, 7
        %v437 = vsub.s32 %v378, %v436
        %v438 = vrot.slane %v292, %v437
        %v439 = vlaneseq
        %v440 = vshrl.u32 %v439, 7
        %v441 = vsub.s32 %v383, %v440
        %v442 = vrot.slane %v293, %v441
        %v443 = vsel %vm388, %v442, %v438
        %v444 = vlaneseq
        %v445 = vshrl.u32 %v444, 7
        %v446 = vsub.s32 %v378, %v445
        %v447 = vrot.slane %v294, %v446
        %v448 = vlaneseq
        %v449 = vshrl.u32 %v448, 7
        %v450 = vsub.s32 %v383, %v449
        %v451 = vrot.slane %v295, %v450
        %v452 = vsel %vm388, %v451, %v447
        %vm453 = vcmask 1041409
        %v454 = vsel %vm453, %v398, %v389
        %vm455 = vcmask 1042434
        %v456 = vsel %vm455, %v407, %v454
        %vm457 = vcmask 1043459
        %v458 = vsel %vm457, %v416, %v456
        %vm459 = vcmask 1044484
        %v460 = vsel %vm459, %v425, %v458
        %vm461 = vcmask 1045509
        %v462 = vsel %vm461, %v434, %v460
        %vm463 = vcmask 1046534
        %v464 = vsel %vm463, %v443, %v462
        %vm465 = vcmask 1047559
        %v466 = vsel %vm465, %v452, %v464
        %vm468 = vcmask 31744
        %v469 = vsel %vm468, 0.0, %v466
        %vm470 = vcmask 162816
        %v471 = vsel %vm470, %v469, 0.0
        %473 = vset.pattern.permute.xlu0 0
        %474 = vperm.xlu0 %473, %v229
        %v475 = vpop.permute.xlu0 %474
        %477 = vset.pattern.permute.xlu0 1
        %478 = vperm.xlu0 %477, %v229
        %v479 = vpop.permute.xlu0 %478
        %481 = vset.pattern.permute.xlu0 2
        %482 = vperm.xlu0 %481, %v229
        %v483 = vpop.permute.xlu0 %482
        %485 = vset.pattern.permute.xlu0 3
        %486 = vperm.xlu0 %485, %v229
        %v487 = vpop.permute.xlu0 %486
        %489 = vset.pattern.permute.xlu0 4
        %490 = vperm.xlu0 %489, %v229
        %v491 = vpop.permute.xlu0 %490
        %493 = vset.pattern.permute.xlu0 5
        %494 = vperm.xlu0 %493, %v229
        %v495 = vpop.permute.xlu0 %494
        %497 = vset.pattern.permute.xlu0 6
        %498 = vperm.xlu0 %497, %v229
        %v499 = vpop.permute.xlu0 %498
        %501 = vset.pattern.permute.xlu0 7
        %502 = vperm.xlu0 %501, %v229
        %v503 = vpop.permute.xlu0 %502
        %505 = vset.pattern.permute.xlu0 8
        %506 = vperm.xlu0 %505, %v229
        %v507 = vpop.permute.xlu0 %506
        %509 = vset.pattern.permute.xlu0 9
        %510 = vperm.xlu0 %509, %v229
        %v511 = vpop.permute.xlu0 %510
        %v513 = vmul.f32 %v471, %v475
        %v514 = vadd.f32 %v511, %v513
        %v515 = vmul.f32 %v471, %v479
        %517 = vrot.lane.b32.xlu0 %v515, 127
        %v518 = vpop.permute.xlu0 %517
        %v520 = vadd.f32 %v514, %v518
        %v521 = vmul.f32 %v471, %v483
        %523 = vrot.lane.b32.xlu0 %v521, 126
        %v524 = vpop.permute.xlu0 %523
        %v526 = vadd.f32 %v520, %v524
        %v527 = vmul.f32 %v471, %v487
        %529 = vrot.lane.b32.xlu0 %v527, 125
        %v530 = vpop.permute.xlu0 %529
        %v532 = vadd.f32 %v526, %v530
        %v533 = vmul.f32 %v471, %v491
        %535 = vrot.lane.b32.xlu0 %v533, 124
        %v536 = vpop.permute.xlu0 %535
        %v538 = vadd.f32 %v532, %v536
        %v539 = vmul.f32 %v471, %v495
        %541 = vrot.lane.b32.xlu0 %v539, 123
        %v542 = vpop.permute.xlu0 %541
        %v544 = vadd.f32 %v538, %v542
        %v545 = vmul.f32 %v471, %v499
        %547 = vrot.lane.b32.xlu0 %v545, 122
        %v548 = vpop.permute.xlu0 %547
        %v550 = vadd.f32 %v544, %v548
        %v551 = vmul.f32 %v471, %v503
        %553 = vrot.lane.b32.xlu0 %v551, 121
        %v554 = vpop.permute.xlu0 %553
        %v556 = vadd.f32 %v550, %v554
        %v557 = vmul.f32 %v471, %v507
        %559 = vrot.lane.b32.xlu0 %v557, 120
        %v560 = vpop.permute.xlu0 %559
        %v562 = vadd.f32 %v556, %v560
        %v563 = vlaneseq
        %v564 = vshrl.u32 %v563, 7
        %vm565 = vcmask 123904
        %v566 = vsel %vm565, %v562, 0.0
        %567 = vadd.xlane.f32.xlu0 %v566
        %v568 = vpop.xlane.xlu0 %567
        %v569 = vrot.slane %v568, 4
        %v570 = vadd.f32 %v568, %v569
        %v571 = vrot.slane %v570, 2
        %v572 = vadd.f32 %v570, %v571
        %v573 = vrot.slane %v572, 1
        %v574 = vadd.f32 %v572, %v573
        %s575 = vtos %v574
        %s576 = smul.f32 %s575, 0.03125
        %v577 = vmul.f32 %v562, %v562
        %v578 = vsel %vm565, %v577, 0.0
        %579 = vadd.xlane.f32.xlu0 %v578
        %v580 = vpop.xlane.xlu0 %579
        %v581 = vrot.slane %v580, 4
        %v582 = vadd.f32 %v580, %v581
        %v583 = vrot.slane %v582, 2
        %v584 = vadd.f32 %v582, %v583
        %v585 = vrot.slane %v584, 1
        %v586 = vadd.f32 %v584, %v585
        %s587 = vtos %v586
        %s588 = smul.f32 %s587, 0.03125
        %s589 = smul.f32 %s576, %s576
        %s590 = ssub.f32 %s588, %s589
        %s591 = sadd.f32 %s590, 1e-05
        %v592 = vstv %s591
        %v593 = vrsqrt.pop %v592
        %s594 = vtos %v593
        %vm595 = vcmp.ge.s32.totalorder %v564, 0
        %vm596 = vcmp.lt.s32.totalorder %v564, 2
        %vm597 = vmand %vm595, %vm596
        %v598 = vstv %s576
        %v599 = vsel %vm597, %v598, 0.0
        %v600 = vstv %s594
        %v601 = vsel %vm597, %v600, 0.0
        %v603 = vrot.slane %v562, 2
        %v605 = vsel %vm565, %v603, 0.0
        %606 = vadd.xlane.f32.xlu0 %v605
        %v607 = vpop.xlane.xlu0 %606
        %v608 = vrot.slane %v607, 4
        %v609 = vadd.f32 %v607, %v608
        %v610 = vrot.slane %v609, 2
        %v611 = vadd.f32 %v609, %v610
        %v612 = vrot.slane %v611, 1
        %v613 = vadd.f32 %v611, %v612
        %s614 = vtos %v613
        %s615 = smul.f32 %s614, 0.03125
        %v617 = vrot.slane %v577, 2
        %v619 = vsel %vm565, %v617, 0.0
        %620 = vadd.xlane.f32.xlu0 %v619
        %v621 = vpop.xlane.xlu0 %620
        %v622 = vrot.slane %v621, 4
        %v623 = vadd.f32 %v621, %v622
        %v624 = vrot.slane %v623, 2
        %v625 = vadd.f32 %v623, %v624
        %v626 = vrot.slane %v625, 1
        %v627 = vadd.f32 %v625, %v626
        %s628 = vtos %v627
        %s629 = smul.f32 %s628, 0.03125
        %s630 = smul.f32 %s615, %s615
        %s631 = ssub.f32 %s629, %s630
        %s632 = sadd.f32 %s631, 1e-05
        %v633 = vstv %s632
        %v634 = vrsqrt.pop %v633
        %s635 = vtos %v634
        %vm636 = vcmp.ge.s32.totalorder %v564, 2
        %vm637 = vcmp.lt.s32.totalorder %v564, 4
        %vm638 = vmand %vm636, %vm637
        %v639 = vstv %s615
        %v640 = vsel %vm638, %v639, %v599
        %v641 = vstv %s635
        %v642 = vsel %vm638, %v641, %v601
        %v643 = vrot.slane %v562, 4
        %v645 = vsel %vm565, %v643, 0.0
        %646 = vadd.xlane.f32.xlu0 %v645
        %v647 = vpop.xlane.xlu0 %646
        %v648 = vrot.slane %v647, 4
        %v649 = vadd.f32 %v647, %v648
        %v650 = vrot.slane %v649, 2
        %v651 = vadd.f32 %v649, %v650
        %v652 = vrot.slane %v651, 1
        %v653 = vadd.f32 %v651, %v652
        %s654 = vtos %v653
        %s655 = smul.f32 %s654, 0.03125
        %v656 = vrot.slane %v577, 4
        %v658 = vsel %vm565, %v656, 0.0
        %659 = vadd.xlane.f32.xlu0 %v658
        %v660 = vpop.xlane.xlu0 %659
        %v661 = vrot.slane %v660, 4
        %v662 = vadd.f32 %v660, %v661
        %v663 = vrot.slane %v662, 2
        %v664 = vadd.f32 %v662, %v663
        %v665 = vrot.slane %v664, 1
        %v666 = vadd.f32 %v664, %v665
        %s667 = vtos %v666
        %s668 = smul.f32 %s667, 0.03125
        %s669 = smul.f32 %s655, %s655
        %s670 = ssub.f32 %s668, %s669
        %s671 = sadd.f32 %s670, 1e-05
        %v672 = vstv %s671
        %v673 = vrsqrt.pop %v672
        %s674 = vtos %v673
        %vm675 = vcmp.ge.s32.totalorder %v564, 4
        %vm676 = vcmp.lt.s32.totalorder %v564, 6
        %vm677 = vmand %vm675, %vm676
        %v678 = vstv %s655
        %v679 = vsel %vm677, %v678, %v640
        %v680 = vstv %s674
        %v681 = vsel %vm677, %v680, %v642
        %v682 = vrot.slane %v562, 6
        %v684 = vsel %vm565, %v682, 0.0
        %685 = vadd.xlane.f32.xlu0 %v684
        %v686 = vpop.xlane.xlu0 %685
        %v687 = vrot.slane %v686, 4
        %v688 = vadd.f32 %v686, %v687
        %v689 = vrot.slane %v688, 2
        %v690 = vadd.f32 %v688, %v689
        %v691 = vrot.slane %v690, 1
        %v692 = vadd.f32 %v690, %v691
        %s693 = vtos %v692
        %s694 = smul.f32 %s693, 0.03125
        %v695 = vrot.slane %v577, 6
        %v697 = vsel %vm565, %v695, 0.0
        %698 = vadd.xlane.f32.xlu0 %v697
        %v699 = vpop.xlane.xlu0 %698
        %v700 = vrot.slane %v699, 4
        %v701 = vadd.f32 %v699, %v700
        %v702 = vrot.slane %v701, 2
        %v703 = vadd.f32 %v701, %v702
        %v704 = vrot.slane %v703, 1
        %v705 = vadd.f32 %v703, %v704
        %s706 = vtos %v705
        %s707 = smul.f32 %s706, 0.03125
        %s708 = smul.f32 %s694, %s694
        %s709 = ssub.f32 %s707, %s708
        %s710 = sadd.f32 %s709, 1e-05
        %v711 = vstv %s710
        %v712 = vrsqrt.pop %v711
        %s713 = vtos %v712
        %vm714 = vcmp.ge.s32.totalorder %v564, 6
        %vm715 = vcmp.lt.s32.totalorder %v564, 8
        %vm716 = vmand %vm714, %vm715
        %v717 = vstv %s694
        %v718 = vsel %vm716, %v717, %v679
        %v719 = vstv %s713
        %v720 = vsel %vm716, %v719, %v681
        %v721 = vsub.f32 %v562, %v718
        %v722 = vmul.f32 %v721, %v720
        %723 = vset.pattern.permute.xlu0 10
        %724 = vperm.xlu0 %723, %v229
        %v725 = vpop.permute.xlu0 %724
        %v727 = vmul.f32 %v722, %v725
        %728 = vset.pattern.permute.xlu0 11
        %729 = vperm.xlu0 %728, %v229
        %v730 = vpop.permute.xlu0 %729
        %v732 = vadd.f32 %v727, %v730
        %v733 = vxor.u32 %v732, 2147483648
        %v734 = vmul.f32 %v733, 1.442695
        %v735 = vpow.pop %v734
        %v736 = vadd.f32 %v735, 1.0
        %v737 = vrcp.pop %v736
        %v738 = vmul.f32 1.0, %v737
        %739 = vst.msk [vmem:[%s205] sm:$0xff] %vm230, %v738
        %v748 = vsel %vm453, %v353, %v352
        %v749 = vsel %vm455, %v354, %v748
        %v750 = vsel %vm457, %v355, %v749
        %v751 = vsel %vm459, %v356, %v750
        %v752 = vsel %vm461, %v357, %v751
        %v753 = vsel %vm463, %v358, %v752
        %v754 = vsel %vm465, %v359, %v753
        %755 = vrot.lane.b32.xlu0 %v754, 4
        %v756 = vpop.permute.xlu0 %755
        %v758 = vsel %vm468, 0.0, %v756
        %v759 = vsel %vm470, %v758, 0.0
        %v760 = vmul.f32 %v759, %v475
        %v761 = vadd.f32 %v511, %v760
        %v762 = vmul.f32 %v759, %v479
        %764 = vrot.lane.b32.xlu0 %v762, 127
        %v765 = vpop.permute.xlu0 %764
        %v767 = vadd.f32 %v761, %v765
        %v768 = vmul.f32 %v759, %v483
        %770 = vrot.lane.b32.xlu0 %v768, 126
        %v771 = vpop.permute.xlu0 %770
        %v773 = vadd.f32 %v767, %v771
        %v774 = vmul.f32 %v759, %v487
        %776 = vrot.lane.b32.xlu0 %v774, 125
        %v777 = vpop.permute.xlu0 %776
        %v779 = vadd.f32 %v773, %v777
        %v780 = vmul.f32 %v759, %v491
        %782 = vrot.lane.b32.xlu0 %v780, 124
        %v783 = vpop.permute.xlu0 %782
        %v785 = vadd.f32 %v779, %v783
        %v786 = vmul.f32 %v759, %v495
        %788 = vrot.lane.b32.xlu0 %v786, 123
        %v789 = vpop.permute.xlu0 %788
        %v791 = vadd.f32 %v785, %v789
        %v792 = vmul.f32 %v759, %v499
        %794 = vrot.lane.b32.xlu0 %v792, 122
        %v795 = vpop.permute.xlu0 %794
        %v797 = vadd.f32 %v791, %v795
        %v798 = vmul.f32 %v759, %v503
        %800 = vrot.lane.b32.xlu0 %v798, 121
        %v801 = vpop.permute.xlu0 %800
        %v803 = vadd.f32 %v797, %v801
        %v804 = vmul.f32 %v759, %v507
        %806 = vrot.lane.b32.xlu0 %v804, 120
        %v807 = vpop.permute.xlu0 %806
        %v809 = vadd.f32 %v803, %v807
        %v810 = vsel %vm565, %v809, 0.0
        %811 = vadd.xlane.f32.xlu0 %v810
        %v812 = vpop.xlane.xlu0 %811
        %v813 = vrot.slane %v812, 4
        %v814 = vadd.f32 %v812, %v813
        %v815 = vrot.slane %v814, 2
        %v816 = vadd.f32 %v814, %v815
        %v817 = vrot.slane %v816, 1
        %v818 = vadd.f32 %v816, %v817
        %s819 = vtos %v818
        %s820 = smul.f32 %s819, 0.03125
        %v821 = vmul.f32 %v809, %v809
        %v822 = vsel %vm565, %v821, 0.0
        %823 = vadd.xlane.f32.xlu0 %v822
        %v824 = vpop.xlane.xlu0 %823
        %v825 = vrot.slane %v824, 4
        %v826 = vadd.f32 %v824, %v825
        %v827 = vrot.slane %v826, 2
        %v828 = vadd.f32 %v826, %v827
        %v829 = vrot.slane %v828, 1
        %v830 = vadd.f32 %v828, %v829
        %s831 = vtos %v830
        %s832 = smul.f32 %s831, 0.03125
        %s833 = smul.f32 %s820, %s820
        %s834 = ssub.f32 %s832, %s833
        %s835 = sadd.f32 %s834, 1e-05
        %v836 = vstv %s835
        %v837 = vrsqrt.pop %v836
        %s838 = vtos %v837
        %v839 = vstv %s820
        %v840 = vsel %vm597, %v839, 0.0
        %v841 = vstv %s838
        %v842 = vsel %vm597, %v841, 0.0
        %v844 = vrot.slane %v809, 2
        %v846 = vsel %vm565, %v844, 0.0
        %847 = vadd.xlane.f32.xlu0 %v846
        %v848 = vpop.xlane.xlu0 %847
        %v849 = vrot.slane %v848, 4
        %v850 = vadd.f32 %v848, %v849
        %v851 = vrot.slane %v850, 2
        %v852 = vadd.f32 %v850, %v851
        %v853 = vrot.slane %v852, 1
        %v854 = vadd.f32 %v852, %v853
        %s855 = vtos %v854
        %s856 = smul.f32 %s855, 0.03125
        %v858 = vrot.slane %v821, 2
        %v860 = vsel %vm565, %v858, 0.0
        %861 = vadd.xlane.f32.xlu0 %v860
        %v862 = vpop.xlane.xlu0 %861
        %v863 = vrot.slane %v862, 4
        %v864 = vadd.f32 %v862, %v863
        %v865 = vrot.slane %v864, 2
        %v866 = vadd.f32 %v864, %v865
        %v867 = vrot.slane %v866, 1
        %v868 = vadd.f32 %v866, %v867
        %s869 = vtos %v868
        %s870 = smul.f32 %s869, 0.03125
        %s871 = smul.f32 %s856, %s856
        %s872 = ssub.f32 %s870, %s871
        %s873 = sadd.f32 %s872, 1e-05
        %v874 = vstv %s873
        %v875 = vrsqrt.pop %v874
        %s876 = vtos %v875
        %v877 = vstv %s856
        %v878 = vsel %vm638, %v877, %v840
        %v879 = vstv %s876
        %v880 = vsel %vm638, %v879, %v842
        %v881 = vrot.slane %v809, 4
        %v883 = vsel %vm565, %v881, 0.0
        %884 = vadd.xlane.f32.xlu0 %v883
        %v885 = vpop.xlane.xlu0 %884
        %v886 = vrot.slane %v885, 4
        %v887 = vadd.f32 %v885, %v886
        %v888 = vrot.slane %v887, 2
        %v889 = vadd.f32 %v887, %v888
        %v890 = vrot.slane %v889, 1
        %v891 = vadd.f32 %v889, %v890
        %s892 = vtos %v891
        %s893 = smul.f32 %s892, 0.03125
        %v894 = vrot.slane %v821, 4
        %v896 = vsel %vm565, %v894, 0.0
        %897 = vadd.xlane.f32.xlu0 %v896
        %v898 = vpop.xlane.xlu0 %897
        %v899 = vrot.slane %v898, 4
        %v900 = vadd.f32 %v898, %v899
        %v901 = vrot.slane %v900, 2
        %v902 = vadd.f32 %v900, %v901
        %v903 = vrot.slane %v902, 1
        %v904 = vadd.f32 %v902, %v903
        %s905 = vtos %v904
        %s906 = smul.f32 %s905, 0.03125
        %s907 = smul.f32 %s893, %s893
        %s908 = ssub.f32 %s906, %s907
        %s909 = sadd.f32 %s908, 1e-05
        %v910 = vstv %s909
        %v911 = vrsqrt.pop %v910
        %s912 = vtos %v911
        %v913 = vstv %s893
        %v914 = vsel %vm677, %v913, %v878
        %v915 = vstv %s912
        %v916 = vsel %vm677, %v915, %v880
        %v917 = vrot.slane %v809, 6
        %v919 = vsel %vm565, %v917, 0.0
        %920 = vadd.xlane.f32.xlu0 %v919
        %v921 = vpop.xlane.xlu0 %920
        %v922 = vrot.slane %v921, 4
        %v923 = vadd.f32 %v921, %v922
        %v924 = vrot.slane %v923, 2
        %v925 = vadd.f32 %v923, %v924
        %v926 = vrot.slane %v925, 1
        %v927 = vadd.f32 %v925, %v926
        %s928 = vtos %v927
        %s929 = smul.f32 %s928, 0.03125
        %v930 = vrot.slane %v821, 6
        %v932 = vsel %vm565, %v930, 0.0
        %933 = vadd.xlane.f32.xlu0 %v932
        %v934 = vpop.xlane.xlu0 %933
        %v935 = vrot.slane %v934, 4
        %v936 = vadd.f32 %v934, %v935
        %v937 = vrot.slane %v936, 2
        %v938 = vadd.f32 %v936, %v937
        %v939 = vrot.slane %v938, 1
        %v940 = vadd.f32 %v938, %v939
        %s941 = vtos %v940
        %s942 = smul.f32 %s941, 0.03125
        %s943 = smul.f32 %s929, %s929
        %s944 = ssub.f32 %s942, %s943
        %s945 = sadd.f32 %s944, 1e-05
        %v946 = vstv %s945
        %v947 = vrsqrt.pop %v946
        %s948 = vtos %v947
        %v949 = vstv %s929
        %v950 = vsel %vm716, %v949, %v914
        %v951 = vstv %s948
        %v952 = vsel %vm716, %v951, %v916
        %v953 = vsub.f32 %v809, %v950
        %v954 = vmul.f32 %v953, %v952
        %955 = vset.pattern.permute.xlu0 12
        %956 = vperm.xlu0 %955, %v229
        %v957 = vpop.permute.xlu0 %956
        %v959 = vmul.f32 %v954, %v957
        %960 = vset.pattern.permute.xlu0 13
        %961 = vperm.xlu0 %960, %v229
        %v962 = vpop.permute.xlu0 %961
        %v964 = vadd.f32 %v959, %v962
        %v965 = vxor.u32 %v964, 2147483648
        %v966 = vmul.f32 %v965, 1.442695
        %v967 = vpow.pop %v966
        %v968 = vadd.f32 %v967, 1.0
        %v969 = vrcp.pop %v968
        %v970 = vmul.f32 1.0, %v969
        %971 = vst.msk [vmem:[%s212] sm:$0xff] %vm230, %v970
        %s972 = sand.u32 %s80, 1
        %s973 = scalar_lea.sflag [#allocation4], %s972
        %s974 = sand.u32 %s80, 1
        %s975 = smul.addr %s974, 8
        %s976 = scalar_lea.vmem [#allocation7], %s975
        %s977 = sand.u32 %s106, 1
        %s978 = scalar_lea.sflag [#allocation9], %s977
        %s979 = sand.u32 %s106, 1
        %s980 = smul.addr %s979, 8
        %s981 = scalar_lea.vmem [#allocation8], %s980
        // Predicated region
        $region37: #{tpu_custom_call.1} parent=27 // pred_check
          %p982 = pneg %p90
        $region38: #{tpu_custom_call.1} parent=27 // pred_check_branch
          %984 = sbr.rel (%p982) target = $region40
        $region39: #{tpu_custom_call.1} parent=27 // pred_region
          %s986 = ssub.s32 128, 128
          %987 = vsyncadd %s973, %s986
          %s988 = smul.addr %s25, 128
          %s989 = scalar_lea.hbm %s2, %s988
          %s991 = sshll.u32 %s976, 4
          %s992 = int_to_ptr.vmem [resolvable:$true] %s991
          %994 = dma.vmem_to_hbm [thread:$0]  %s992, 128, %s989, %s973
        $region40: #{tpu_custom_call.1} parent=27 // pred_fallthru
          _
        // Predicated region
        $region41: #{tpu_custom_call.1} parent=27 // pred_check
          %p995 = pneg %p116
        $region42: #{tpu_custom_call.1} parent=27 // pred_check_branch
          %997 = sbr.rel (%p995) target = $region44
        $region43: #{tpu_custom_call.1} parent=27 // pred_region
          %s999 = ssub.s32 128, 128
          %1000 = vsyncadd %s978, %s999
          %s1001 = smul.addr %s25, 128
          %s1002 = scalar_lea.hbm %s3, %s1001
          %s1004 = sshll.u32 %s981, 4
          %s1005 = int_to_ptr.vmem [resolvable:$true] %s1004
          %1007 = dma.vmem_to_hbm [thread:$0]  %s1005, 128, %s1002, %s978
        $region44: #{tpu_custom_call.1} parent=27 // pred_fallthru
          _
      $region28: #{tpu_custom_call.1} parent=5 // pred_fallthru
        _
      %p1008 = scmp.le.s32.totalorder 2, %s20
      // Predicated region
      $region45: #{tpu_custom_call.1} parent=5 // pred_check
        %p1009 = pneg %p1008
      $region46: #{tpu_custom_call.1} parent=5 // pred_check_branch
        %1011 = sbr.rel (%p1009) target = $region48
      $region47: #{tpu_custom_call.1} parent=5 // pred_region
        %s1012 = ssub.s32 %s20, 2
        // Predicated region
        $region49: #{tpu_custom_call.1} parent=47 // pred_check
          %p1013 = pneg %p96
        $region50: #{tpu_custom_call.1} parent=47 // pred_check_branch
          %1015 = sbr.rel (%p1013) target = $region52
        $region51: #{tpu_custom_call.1} parent=47 // pred_region
          %s1016 = sand.u32 %s81, 1
          %s1017 = scalar_lea.sflag [#allocation4], %s1016
          %s1018 = sand.u32 %s81, 1
          %s1019 = smul.addr %s1018, 8
          %s1020 = scalar_lea.vmem [#allocation7], %s1019
          %1021 = dma.done %s1017, 128
        $region52: #{tpu_custom_call.1} parent=47 // pred_fallthru
          _
        // Predicated region
        $region53: #{tpu_custom_call.1} parent=47 // pred_check
          %p1022 = pneg %p122
        $region54: #{tpu_custom_call.1} parent=47 // pred_check_branch
          %1024 = sbr.rel (%p1022) target = $region56
        $region55: #{tpu_custom_call.1} parent=47 // pred_region
          %s1025 = sand.u32 %s107, 1
          %s1026 = scalar_lea.sflag [#allocation9], %s1025
          %s1027 = sand.u32 %s107, 1
          %s1028 = smul.addr %s1027, 8
          %s1029 = scalar_lea.vmem [#allocation8], %s1028
          %1030 = dma.done %s1026, 128
        $region56: #{tpu_custom_call.1} parent=47 // pred_fallthru
          _
      $region48: #{tpu_custom_call.1} parent=5 // pred_fallthru
        _
    $region6: #{tpu_custom_call.1} parent=1 // loop_footer
      %s24 = sadd.s32 1, %s20
    $region7: #{tpu_custom_call.1} parent=1 // loop_footer_branch
      %19 = sbr.rel target = $region3
    $region8: #{tpu_custom_call.1} parent=1 // loop_exit
      _
    %1031 = vsyncpa [#allocation3], 1
    %s1032 = scalar_lea.sflag [#allocation3], 1
    %1033 = vsyncpa %s1032, 1
    %1034 = vsyncpa [#allocation6], 1
    %1035 = vsyncpa [#allocation4], 1
    %s1036 = scalar_lea.sflag [#allocation4], 1
    %1037 = vsyncpa %s1036, 1
    %1038 = vsyncpa [#allocation9], 1
    %s1039 = scalar_lea.sflag [#allocation9], 1
    %1040 = vsyncpa %s1039, 1

</llo_original>
